<compile_context>
chip_gen: v5e
topology: v5e:2x2
jax: 0.10.0
libtpu: 0.0.40
codegen_flags: <defaults>
</compile_context>

<pallas_src>
import jax
import jax.numpy as jnp
from jax.experimental import pallas as pl
from jax.experimental.pallas import tpu as pltpu

HIDDEN_SIZE = 128        # small, TPU-lane-aligned stand-in for the real hidden size
OUTPUT_BUCKETS = 8
IN_FEATURES = 768        # fixed by the module (Linear(768, HIDDEN_SIZE))
OUT_PAD = 128            # lane-dense padded output width (>= OUTPUT_BUCKETS)


def _round_up(x, m):
    return (x + m - 1) // m * m


def _perspective_kernel(fw_ref, fb_ref, stm_ref,
                        w_w_ref, b_w_ref, w_b_ref, b_b_ref,
                        w_o1_ref, w_o2_ref, b_o_ref, out_ref):
    # Perspective hidden layers: bf16 operands, f32 accumulation on the MXU.
    wh = jnp.dot(fw_ref[...], w_w_ref[...],
                 preferred_element_type=jnp.float32) + b_w_ref[...]
    bh = jnp.dot(fb_ref[...], w_b_ref[...],
                 preferred_element_type=jnp.float32) + b_b_ref[...]

    # Perspective mux without concatenation: select ordering per row.
    m = stm_ref[...] > 0.5                       # (bb, 1) bool, lane-broadcast
    h1 = jnp.where(m, wh, bh)                    # first half of the cat
    h2 = jnp.where(m, bh, wh)                    # second half of the cat

    # clipped-square activation on each (bb, H) half
    h1 = jnp.clip(h1, 0.0, 1.0)
    h1 = h1 * h1
    h2 = jnp.clip(h2, 0.0, 1.0)
    h2 = h2 * h2

    # Output layer split across the two halves; lane-dense (bb, OUT_PAD) store.
    logits = (jnp.dot(h1, w_o1_ref[...], preferred_element_type=jnp.float32)
              + jnp.dot(h2, w_o2_ref[...], preferred_element_type=jnp.float32)
              + b_o_ref[...])
    out_ref[...] = logits


def perspective_net_forward(fw, fb, is_white_stm, output_buckets, params,
                            *, block_b=256):
    B = fw.shape[0]
    H, OB = HIDDEN_SIZE, OUTPUT_BUCKETS

    bb = min(block_b, _round_up(B, 8))           # batch tile (multiple of 8)
    Bp = _round_up(B, bb)                        # padded batch

    # bf16 features (lossless: values are exactly {0,1}); pad batch to the tile.
    fw_b = jnp.zeros((Bp, IN_FEATURES), jnp.bfloat16).at[:B].set(
        fw.astype(jnp.bfloat16))
    fb_b = jnp.zeros((Bp, IN_FEATURES), jnp.bfloat16).at[:B].set(
        fb.astype(jnp.bfloat16))
    stm = jnp.zeros((Bp, 1), jnp.float32).at[:B].set(
        is_white_stm.astype(jnp.float32).reshape(B, 1))

    w_w, b_w, w_b, b_b, w_o, b_o = params
    # Pre-transpose PyTorch-style (out, in) weights to (in, out) for x @ W.
    w_w_t = w_w.T.astype(jnp.bfloat16)           # (768, H)
    w_b_t = w_b.T.astype(jnp.bfloat16)           # (768, H)
    b_w_r = b_w.reshape(1, H).astype(jnp.float32)
    b_b_r = b_b.reshape(1, H).astype(jnp.float32)
    # Output weights: split by perspective half and pad lanes to OUT_PAD.
    w_o_t = w_o.T.astype(jnp.float32)            # (2H, OB)
    w_o1 = jnp.zeros((H, OUT_PAD), jnp.float32).at[:, :OB].set(w_o_t[:H])
    w_o2 = jnp.zeros((H, OUT_PAD), jnp.float32).at[:, :OB].set(w_o_t[H:])
    b_o_r = jnp.zeros((1, OUT_PAD), jnp.float32).at[:, :OB].set(
        b_o.reshape(1, OB).astype(jnp.float32))

    grid = (Bp // bb,)
    batch_spec = lambda w: pl.BlockSpec((bb, w), lambda i: (i, 0))
    const_spec = lambda shape: pl.BlockSpec(shape, lambda i: (0, 0))

    # Explicit VMEM budget: double-buffered feature/output/stm tiles + resident
    # weights, with 2x slack + 2 MiB headroom (clamped to sane bounds).
    vmem_bytes = int(
        2 * 2 * bb * IN_FEATURES * 2             # fw/fb tiles, 2 buffers, bf16
        + 2 * bb * OUT_PAD * 4                   # output tiles, 2 buffers, f32
        + 2 * bb * 128 * 4                       # stm tiles (lane-padded)
        + 2 * IN_FEATURES * H * 2                # perspective weights (bf16)
        + 2 * H * OUT_PAD * 4 + 4 * 128 * 4      # output weights + biases
    ) * 2 + (2 << 20)
    vmem_bytes = min(max(vmem_bytes, 8 << 20), 96 << 20)

    logits_padded = pl.pallas_call(
        _perspective_kernel,
        out_shape=jax.ShapeDtypeStruct((Bp, OUT_PAD), jnp.float32),
        grid=grid,
        in_specs=[
            batch_spec(IN_FEATURES),             # features_white (bb, 768)
            batch_spec(IN_FEATURES),             # features_black (bb, 768)
            batch_spec(1),                       # is_white_stm   (bb, 1)
            const_spec((IN_FEATURES, H)),        # W_white^T (bf16)
            const_spec((1, H)),                  # b_white
            const_spec((IN_FEATURES, H)),        # W_black^T (bf16)
            const_spec((1, H)),                  # b_black
            const_spec((H, OUT_PAD)),            # W_out^T top half (padded)
            const_spec((H, OUT_PAD)),            # W_out^T bottom half (padded)
            const_spec((1, OUT_PAD)),            # b_out (padded)
        ],
        out_specs=batch_spec(OUT_PAD),
        compiler_params=pltpu.CompilerParams(
            dimension_semantics=("parallel",),
            vmem_limit_bytes=vmem_bytes),
    )(fw_b, fb_b, stm, w_w_t, b_w_r, w_b_t, b_b_r, w_o1, w_o2, b_o_r)

    # Bucket gather in the wrapper (keeps the kernel store lane-dense).
    logits = logits_padded[:B, :OB]
    idx = output_buckets.astype(jnp.int32).reshape(B, 1)
    return jnp.take_along_axis(logits, idx, axis=1)


def init_params(key):
    # deterministic uniform(-0.1, 0.1) init, PyTorch Linear weight layout (out, in)
    ks = jax.random.split(key, 6)
    u = lambda k, shape: jax.random.uniform(k, shape, jnp.float32, -0.1, 0.1)
    w_w = u(ks[0], (HIDDEN_SIZE, IN_FEATURES))
    b_w = u(ks[1], (HIDDEN_SIZE,))
    w_b = u(ks[2], (HIDDEN_SIZE, IN_FEATURES))
    b_b = u(ks[3], (HIDDEN_SIZE,))
    w_o = u(ks[4], (OUTPUT_BUCKETS, 2 * HIDDEN_SIZE))
    b_o = u(ks[5], (OUTPUT_BUCKETS,))
    return (w_w, b_w, w_b, b_b, w_o, b_o)


def reference_forward(fw, fb, is_white_stm, output_buckets, params):
    # Same math as the PyTorch module; features / perspective weights quantized
    # to bf16 (matching the kernel's MXU inputs) with f32 accumulation.
    w_w, b_w, w_b, b_b, w_o, b_o = params
    up = lambda x: x.astype(jnp.bfloat16).astype(jnp.float32)
    wh = up(fw) @ up(w_w).T + b_w
    bh = up(fb) @ up(w_b).T + b_b
    m = is_white_stm.astype(jnp.float32).reshape(-1, 1)
    hidden = m * jnp.concatenate([wh, bh], axis=-1) \
        + (1.0 - m) * jnp.concatenate([bh, wh], axis=-1)
    hidden = jnp.clip(hidden, 0.0, 1.0) ** 2
    logits = hidden @ w_o.T + b_o
    idx = output_buckets.astype(jnp.int32).reshape(-1, 1)
    return jnp.take_along_axis(logits, idx, axis=1)


if __name__ == "__main__":
    key = jax.random.PRNGKey(0)
    k_fw, k_fb, k_stm, k_bkt, k_params = jax.random.split(key, 5)

    B = 300  # deliberately not a multiple of the tile -> exercises padding path
    # binary sparse-ish feature vectors, as in the chess feature encoding
    fw = (jax.random.uniform(k_fw, (B, IN_FEATURES)) < 0.05).astype(jnp.float32)
    fb = (jax.random.uniform(k_fb, (B, IN_FEATURES)) < 0.05).astype(jnp.float32)
    is_white_stm = jax.random.bernoulli(k_stm, 0.5, (B, 1))
    output_buckets = jax.random.randint(k_bkt, (B, 1), 0, OUTPUT_BUCKETS, jnp.int32)

    params = init_params(k_params)

    out = perspective_net_forward(fw, fb, is_white_stm, output_buckets, params,
                                  block_b=128)
    out = jax.block_until_ready(out)

    ref = reference_forward(fw, fb, is_white_stm, output_buckets, params)
    assert out.shape == (B, 1)
    assert jnp.allclose(out, ref, atol=1e-4, rtol=1e-4), \
        float(jnp.max(jnp.abs(out - ref)))

    print("KERNEL_OK")
</pallas_src>

<mosaic_0001>
module attributes {stable_mosaic.version = 11 : i64} {
  func.func @_perspective_kernel(%arg0: i32, %arg1: memref<128x768xbf16, #tpu.memory_space<vmem>>, %arg2: memref<128x768xbf16, #tpu.memory_space<vmem>>, %arg3: memref<128x1xf32, #tpu.memory_space<vmem>>, %arg4: memref<768x128xbf16, #tpu.memory_space<vmem>>, %arg5: memref<1x128xf32, #tpu.memory_space<vmem>>, %arg6: memref<768x128xbf16, #tpu.memory_space<vmem>>, %arg7: memref<1x128xf32, #tpu.memory_space<vmem>>, %arg8: memref<128x128xf32, #tpu.memory_space<vmem>>, %arg9: memref<128x128xf32, #tpu.memory_space<vmem>>, %arg10: memref<1x128xf32, #tpu.memory_space<vmem>>, %arg11: memref<128x128xf32, #tpu.memory_space<vmem>>) attributes {dimension_semantics = [#tpu.dimension_semantics<parallel>], iteration_bounds = array<i64: 3>, scalar_prefetch = 0 : i64, scratch_operands = 0 : i64, tpu.core_type = #tpu.core_type<tc>, window_params = [{transform_indices = @transform_0, window_bounds = array<i64: 128, 768>}, {transform_indices = @transform_1, window_bounds = array<i64: 128, 768>}, {transform_indices = @transform_2, window_bounds = array<i64: 128, 1>}, {pipeline_mode = #tpu.pipeline_mode<synchronous>, transform_indices = @transform_3, window_bounds = array<i64: 768, 128>}, {pipeline_mode = #tpu.pipeline_mode<synchronous>, transform_indices = @transform_4, window_bounds = array<i64: 1, 128>}, {pipeline_mode = #tpu.pipeline_mode<synchronous>, transform_indices = @transform_5, window_bounds = array<i64: 768, 128>}, {pipeline_mode = #tpu.pipeline_mode<synchronous>, transform_indices = @transform_6, window_bounds = array<i64: 1, 128>}, {pipeline_mode = #tpu.pipeline_mode<synchronous>, transform_indices = @transform_7, window_bounds = array<i64: 128, 128>}, {pipeline_mode = #tpu.pipeline_mode<synchronous>, transform_indices = @transform_8, window_bounds = array<i64: 128, 128>}, {pipeline_mode = #tpu.pipeline_mode<synchronous>, transform_indices = @transform_9, window_bounds = array<i64: 1, 128>}, {transform_indices = @transform_10, window_bounds = array<i64: 128, 128>}]} {
    %c0 = arith.constant 0 : index
    %c0_0 = arith.constant 0 : index
    %0 = vector.load %arg1[%c0, %c0_0] : memref<128x768xbf16, #tpu.memory_space<vmem>>, vector<128x768xbf16>
    %c0_1 = arith.constant 0 : index
    %c0_2 = arith.constant 0 : index
    %1 = vector.load %arg4[%c0_1, %c0_2] : memref<768x128xbf16, #tpu.memory_space<vmem>>, vector<768x128xbf16>
    %cst = arith.constant dense<0.000000e+00> : vector<128x128xf32>
    %2 = tpu.matmul %0, %1, %cst {dimension_numbers = #tpu.dot_dimension_numbers<[1], [0], [0], [1], [0, 0, 1, 1], [], []>} : vector<128x768xbf16>, vector<768x128xbf16>, vector<128x128xf32> -> vector<128x128xf32>
    %c0_3 = arith.constant 0 : index
    %c0_4 = arith.constant 0 : index
    %3 = vector.load %arg5[%c0_3, %c0_4] : memref<1x128xf32, #tpu.memory_space<vmem>>, vector<1x128xf32>
    %4 = vector.broadcast %3 : vector<1x128xf32> to vector<128x128xf32>
    %5 = arith.addf %2, %4 : vector<128x128xf32>
    %c0_5 = arith.constant 0 : index
    %c0_6 = arith.constant 0 : index
    %6 = vector.load %arg2[%c0_5, %c0_6] : memref<128x768xbf16, #tpu.memory_space<vmem>>, vector<128x768xbf16>
    %c0_7 = arith.constant 0 : index
    %c0_8 = arith.constant 0 : index
    %7 = vector.load %arg6[%c0_7, %c0_8] : memref<768x128xbf16, #tpu.memory_space<vmem>>, vector<768x128xbf16>
    %cst_9 = arith.constant dense<0.000000e+00> : vector<128x128xf32>
    %8 = tpu.matmul %6, %7, %cst_9 {dimension_numbers = #tpu.dot_dimension_numbers<[1], [0], [0], [1], [0, 0, 1, 1], [], []>} : vector<128x768xbf16>, vector<768x128xbf16>, vector<128x128xf32> -> vector<128x128xf32>
    %c0_10 = arith.constant 0 : index
    %c0_11 = arith.constant 0 : index
    %9 = vector.load %arg7[%c0_10, %c0_11] : memref<1x128xf32, #tpu.memory_space<vmem>>, vector<1x128xf32>
    %10 = vector.broadcast %9 : vector<1x128xf32> to vector<128x128xf32>
    %11 = arith.addf %8, %10 : vector<128x128xf32>
    %c0_12 = arith.constant 0 : index
    %c0_13 = arith.constant 0 : index
    %12 = vector.load %arg3[%c0_12, %c0_13] : memref<128x1xf32, #tpu.memory_space<vmem>>, vector<128x1xf32>
    %cst_14 = arith.constant 5.000000e-01 : f32
    %13 = vector.broadcast %cst_14 : f32 to vector<128x1xf32>
    %14 = arith.cmpf ogt, %12, %13 : vector<128x1xf32>
    %15 = vector.shape_cast %14 : vector<128x1xi1> to vector<128x1xi1>
    %16 = vector.broadcast %15 : vector<128x1xi1> to vector<128x128xi1>
    %17 = arith.select %16, %5, %11 : vector<128x128xi1>, vector<128x128xf32>
    %18 = vector.shape_cast %14 : vector<128x1xi1> to vector<128x1xi1>
    %19 = vector.broadcast %18 : vector<128x1xi1> to vector<128x128xi1>
    %20 = arith.select %19, %11, %5 : vector<128x128xi1>, vector<128x128xf32>
    %cst_15 = arith.constant 0.000000e+00 : f32
    %cst_16 = arith.constant 1.000000e+00 : f32
    %21 = vector.broadcast %cst_15 : f32 to vector<128x128xf32>
    %22 = arith.maximumf %21, %17 : vector<128x128xf32>
    %23 = vector.broadcast %cst_16 : f32 to vector<128x128xf32>
    %24 = arith.minimumf %23, %22 : vector<128x128xf32>
    %25 = arith.mulf %24, %24 : vector<128x128xf32>
    %cst_17 = arith.constant 0.000000e+00 : f32
    %cst_18 = arith.constant 1.000000e+00 : f32
    %26 = vector.broadcast %cst_17 : f32 to vector<128x128xf32>
    %27 = arith.maximumf %26, %20 : vector<128x128xf32>
    %28 = vector.broadcast %cst_18 : f32 to vector<128x128xf32>
    %29 = arith.minimumf %28, %27 : vector<128x128xf32>
    %30 = arith.mulf %29, %29 : vector<128x128xf32>
    %c0_19 = arith.constant 0 : index
    %c0_20 = arith.constant 0 : index
    %31 = vector.load %arg8[%c0_19, %c0_20] : memref<128x128xf32, #tpu.memory_space<vmem>>, vector<128x128xf32>
    %cst_21 = arith.constant dense<0.000000e+00> : vector<128x128xf32>
    %32 = tpu.matmul %25, %31, %cst_21 {dimension_numbers = #tpu.dot_dimension_numbers<[1], [0], [0], [1], [0, 0, 1, 1], [], []>} : vector<128x128xf32>, vector<128x128xf32>, vector<128x128xf32> -> vector<128x128xf32>
    %c0_22 = arith.constant 0 : index
    %c0_23 = arith.constant 0 : index
    %33 = vector.load %arg9[%c0_22, %c0_23] : memref<128x128xf32, #tpu.memory_space<vmem>>, vector<128x128xf32>
    %cst_24 = arith.constant dense<0.000000e+00> : vector<128x128xf32>
    %34 = tpu.matmul %30, %33, %cst_24 {dimension_numbers = #tpu.dot_dimension_numbers<[1], [0], [0], [1], [0, 0, 1, 1], [], []>} : vector<128x128xf32>, vector<128x128xf32>, vector<128x128xf32> -> vector<128x128xf32>
    %35 = arith.addf %32, %34 : vector<128x128xf32>
    %c0_25 = arith.constant 0 : index
    %c0_26 = arith.constant 0 : index
    %36 = vector.load %arg10[%c0_25, %c0_26] : memref<1x128xf32, #tpu.memory_space<vmem>>, vector<1x128xf32>
    %37 = vector.broadcast %36 : vector<1x128xf32> to vector<128x128xf32>
    %38 = arith.addf %35, %37 : vector<128x128xf32>
    %c0_27 = arith.constant 0 : index
    %c0_28 = arith.constant 0 : index
    %39 = vector.load %arg11[%c0_27, %c0_28] : memref<128x128xf32, #tpu.memory_space<vmem>>, vector<128x128xf32>
    tpu.vector_store %arg11[%c0_27, %c0_28], %38 {strides = array<i32>} : memref<128x128xf32, #tpu.memory_space<vmem>>, vector<128x128xf32>,
    return
  }
  func.func @transform_0(%arg0: i32) -> (i32, i32) {
    %c0_i32 = arith.constant 0 : i32
    %c0_i32_0 = arith.constant 0 : i32
    return %arg0, %c0_i32 : i32, i32
  }
  func.func @transform_1(%arg0: i32) -> (i32, i32) {
    %c0_i32 = arith.constant 0 : i32
    %c0_i32_0 = arith.constant 0 : i32
    return %arg0, %c0_i32 : i32, i32
  }
  func.func @transform_2(%arg0: i32) -> (i32, i32) {
    %c0_i32 = arith.constant 0 : i32
    %c0_i32_0 = arith.constant 0 : i32
    return %arg0, %c0_i32 : i32, i32
  }
  func.func @transform_3(%arg0: i32) -> (i32, i32) {
    %c0_i32 = arith.constant 0 : i32
    %c0_i32_0 = arith.constant 0 : i32
    %c0_i32_1 = arith.constant 0 : i32
    return %c0_i32, %c0_i32_0 : i32, i32
  }
  func.func @transform_4(%arg0: i32) -> (i32, i32) {
    %c0_i32 = arith.constant 0 : i32
    %c0_i32_0 = arith.constant 0 : i32
    %c0_i32_1 = arith.constant 0 : i32
    return %c0_i32, %c0_i32_0 : i32, i32
  }
  func.func @transform_5(%arg0: i32) -> (i32, i32) {
    %c0_i32 = arith.constant 0 : i32
    %c0_i32_0 = arith.constant 0 : i32
    %c0_i32_1 = arith.constant 0 : i32
    return %c0_i32, %c0_i32_0 : i32, i32
  }
  func.func @transform_6(%arg0: i32) -> (i32, i32) {
    %c0_i32 = arith.constant 0 : i32
    %c0_i32_0 = arith.constant 0 : i32
    %c0_i32_1 = arith.constant 0 : i32
    return %c0_i32, %c0_i32_0 : i32, i32
  }
  func.func @transform_7(%arg0: i32) -> (i32, i32) {
    %c0_i32 = arith.constant 0 : i32
    %c0_i32_0 = arith.constant 0 : i32
    %c0_i32_1 = arith.constant 0 : i32
    return %c0_i32, %c0_i32_0 : i32, i32
  }
  func.func @transform_8(%arg0: i32) -> (i32, i32) {
    %c0_i32 = arith.constant 0 : i32
    %c0_i32_0 = arith.constant 0 : i32
    %c0_i32_1 = arith.constant 0 : i32
    return %c0_i32, %c0_i32_0 : i32, i32
  }
  func.func @transform_9(%arg0: i32) -> (i32, i32) {
    %c0_i32 = arith.constant 0 : i32
    %c0_i32_0 = arith.constant 0 : i32
    %c0_i32_1 = arith.constant 0 : i32
    return %c0_i32, %c0_i32_0 : i32, i32
  }
  func.func @transform_10(%arg0: i32) -> (i32, i32) {
    %c0_i32 = arith.constant 0 : i32
    %c0_i32_0 = arith.constant 0 : i32
    return %arg0, %c0_i32 : i32, i32
  }
}

</mosaic_0001>

<llo_original>
// kernel: tpu_custom_call.1
$region0: #{tpu_custom_call.1}
  #allocation0 [shape = 'u32[]', space=smem, size = 0x4, offset = 0x4, fixed_abs, tag = 'smem constant byte address 0x4 - core index']
  #allocation1 [shape = 'u32[72,128]{1,0:T(1,128)}', space=vmem, size = 0x9000, scoped, tag = 'internal scratch']
  %s0 = inlined_call_operand.hbm [shape: bf16[384,768], index: 0, kind: input, shape index: {}]
  %s1 = inlined_call_operand.hbm [shape: bf16[384,768], index: 1, kind: input, shape index: {}]
  %s2 = inlined_call_operand.vmem [shape: f32[384,1], index: 2, kind: input, shape index: {}]
  %s3 = inlined_call_operand.vmem [shape: bf16[768,128], index: 3, kind: input, shape index: {}]
  %s4 = inlined_call_operand.vmem [shape: f32[1,128], index: 4, kind: input, shape index: {}]
  %s5 = inlined_call_operand.hbm [shape: bf16[768,128], index: 5, kind: input, shape index: {}]
  %s6 = inlined_call_operand.vmem [shape: f32[1,128], index: 6, kind: input, shape index: {}]
  %s7 = inlined_call_operand.hbm [shape: f32[128,128], index: 7, kind: input, shape index: {}]
  %s8 = inlined_call_operand.hbm [shape: f32[128,128], index: 8, kind: input, shape index: {}]
  %s9 = inlined_call_operand.vmem [shape: f32[1,128], index: 9, kind: input, shape index: {}]
  %s10 = inlined_call_operand.hbm [shape: f32[384,128], index: 10, kind: output, shape index: {}]
  %s11 = sld [smem:[#allocation0]]
  $region93: #{tpu_custom_call.1} parent=0
    _
  %s13 = ssub.s32 1, %s11
  %s14 = scalar_select 0, %s13, %s11
  $region1: #{tpu_custom_call.1} parent=0
    #allocation2 [shape = 'u8[393216]{0}', space=vmem, size = 0x60000, scoped, tag = 'input window, operand 0']
    #allocation3 [shape = 's32[2]{0}', space=sflag, size = 0x8, scoped, tag = 'scoped memory for tpu_custom_call.1']
    #allocation4 [shape = 's32[2]{0}', space=sflag, size = 0x8, scoped, tag = 'scoped memory for tpu_custom_call.1']
    #allocation5 [shape = 'u8[393216]{0}', space=vmem, size = 0x60000, scoped, tag = 'input window, operand 1']
    #allocation6 [shape = 's32[2]{0}', space=sflag, size = 0x8, scoped, tag = 'scoped memory for tpu_custom_call.1']
    #allocation7 [shape = 'u8[196608]{0}', space=vmem, size = 0x30000, scoped, tag = 'input window, operand 5, single buffered']
    #allocation8 [shape = 'u8[65536]{0}', space=vmem, size = 0x10000, scoped, tag = 'input window, operand 7, single buffered']
    #allocation9 [shape = 's32[1]{0}', space=sflag, size = 0x4, scoped, tag = 'scoped memory for tpu_custom_call.1']
    #allocation10 [shape = 'u8[65536]{0}', space=vmem, size = 0x10000, scoped, tag = 'input window, operand 8, single buffered']
    #allocation11 [shape = 'u8[131072]{0}', space=vmem, size = 0x20000, scoped, tag = 'output window, operand 0']
    %15 = vsyncpa [#allocation3], 0
    %s16 = scalar_lea.sflag [#allocation3], 1
    %17 = vsyncpa %s16, 0
    %18 = vsyncpa [#allocation6], 0
    %s19 = scalar_lea.sflag [#allocation6], 1
    %20 = vsyncpa %s19, 0
    %21 = vsyncpa [#allocation9], 0
    %22 = vsyncpa [#allocation4], 0
    %s23 = scalar_lea.sflag [#allocation4], 1
    %24 = vsyncpa %s23, 0
    loop: start=0, step=1, limit=5
    $region2: #{tpu_custom_call.1} parent=1 // loop_pre_header
      _
    $region3: #{tpu_custom_call.1} parent=1 // loop_header
      %s26 = sphi 0, %s30
      %p27 = scmp.ge.s32.totalorder %s26, 5
      %s36 = sphi 0, %s38
      %s39 = sphi 0, %s36
      %s40 = sphi 0, %s39
      %s56 = sphi 0, %s40
      %s62 = sphi 0, %s64
      %s65 = sphi 0, %s62
      %s66 = sphi 0, %s65
      %s82 = sphi 0, %s66
      %s88 = sphi 0, %s90
      %s91 = sphi 0, %s88
      %s92 = sphi 0, %s91
      %s108 = sphi 0, %s92
      %s112 = sphi 0, %s112
      %s114 = sphi 0, %s112
      %s115 = sphi 0, %s114
      %s129 = sphi 0, %s115
      %s133 = sphi 0, %s133
      %s135 = sphi 0, %s133
      %s136 = sphi 0, %s135
      %s150 = sphi 0, %s136
      %s154 = sphi 0, %s154
      %s156 = sphi 0, %s154
      %s157 = sphi 0, %s156
      %s171 = sphi 0, %s157
      %s175 = sphi 0, %s175
      %s177 = sphi 0, %s175
      %s178 = sphi 0, %s177
      %s192 = sphi 0, %s178
      %s196 = sphi 0, %s196
      %s198 = sphi 0, %s196
      %s199 = sphi 0, %s198
      %s213 = sphi 0, %s199
      %s217 = sphi 0, %s217
      %s219 = sphi 0, %s217
      %s220 = sphi 0, %s219
      %s234 = sphi 0, %s220
      %s238 = sphi 0, %s238
      %s240 = sphi 0, %s238
      %s241 = sphi 0, %s240
      %s255 = sphi 0, %s241
      %s261 = sphi 0, %s263
      %s264 = sphi 0, %s261
      %s265 = sphi 0, %s264
      %s281 = sphi 0, %s265
    $region4: #{tpu_custom_call.1} parent=1 // loop_header_branch
      %29 = sbr.rel (%p27) target = $region8
    $region5: #{tpu_custom_call.1} parent=1 // loop_body
      %s31 = ssub.s32 %s26, 1
      %s32 = ssub.s32 %s26, 2
      %s33 = sadd.s32 %s26, 1
      %s34 = ssub.s32 %s26, %s33
      %p35 = scmp.eq.s32.totalorder %s34, 0
      %s37 = sadd.s32 %s36, 1
      %s38 = scalar_select %p35, %s36, %s37
      %p41 = pneg %p35
      %p42 = scmp.eq.s32.totalorder %s26, 2
      %p43 = por %p41, %p42
      %p44 = scmp.ne.s32.totalorder %s36, %s39
      %p45 = scmp.eq.s32.totalorder %s26, 0
      %p46 = por %p44, %p45
      %p47 = scmp.ne.s32.totalorder %s36, %s39
      %p48 = scmp.eq.s32.totalorder %s31, 2
      %p49 = por %p47, %p48
      %p50 = scmp.ne.s32.totalorder %s39, %s40
      %p51 = scmp.eq.s32.totalorder %s31, 0
      %p52 = por %p50, %p51
      %p53 = scmp.ne.s32.totalorder %s39, %s40
      %p54 = scmp.eq.s32.totalorder %s32, 2
      %p55 = por %p53, %p54
      %p57 = scmp.ne.s32.totalorder %s40, %s56
      %p58 = scmp.eq.s32.totalorder %s32, 0
      %p59 = por %p57, %p58
      %s60 = ssub.s32 %s26, %s33
      %p61 = scmp.eq.s32.totalorder %s60, 0
      %s63 = sadd.s32 %s62, 1
      %s64 = scalar_select %p61, %s62, %s63
      %p67 = pneg %p61
      %p68 = scmp.eq.s32.totalorder %s26, 2
      %p69 = por %p67, %p68
      %p70 = scmp.ne.s32.totalorder %s62, %s65
      %p71 = scmp.eq.s32.totalorder %s26, 0
      %p72 = por %p70, %p71
      %p73 = scmp.ne.s32.totalorder %s62, %s65
      %p74 = scmp.eq.s32.totalorder %s31, 2
      %p75 = por %p73, %p74
      %p76 = scmp.ne.s32.totalorder %s65, %s66
      %p77 = scmp.eq.s32.totalorder %s31, 0
      %p78 = por %p76, %p77
      %p79 = scmp.ne.s32.totalorder %s65, %s66
      %p80 = scmp.eq.s32.totalorder %s32, 2
      %p81 = por %p79, %p80
      %p83 = scmp.ne.s32.totalorder %s66, %s82
      %p84 = scmp.eq.s32.totalorder %s32, 0
      %p85 = por %p83, %p84
      %s86 = ssub.s32 %s26, %s33
      %p87 = scmp.eq.s32.totalorder %s86, 0
      %s89 = sadd.s32 %s88, 1
      %s90 = scalar_select %p87, %s88, %s89
      %p93 = pneg %p87
      %p94 = scmp.eq.s32.totalorder %s26, 2
      %p95 = por %p93, %p94
      %p96 = scmp.ne.s32.totalorder %s88, %s91
      %p97 = scmp.eq.s32.totalorder %s26, 0
      %p98 = por %p96, %p97
      %p99 = scmp.ne.s32.totalorder %s88, %s91
      %p100 = scmp.eq.s32.totalorder %s31, 2
      %p101 = por %p99, %p100
      %p102 = scmp.ne.s32.totalorder %s91, %s92
      %p103 = scmp.eq.s32.totalorder %s31, 0
      %p104 = por %p102, %p103
      %p105 = scmp.ne.s32.totalorder %s91, %s92
      %p106 = scmp.eq.s32.totalorder %s32, 2
      %p107 = por %p105, %p106
      %p109 = scmp.ne.s32.totalorder %s92, %s108
      %p110 = scmp.eq.s32.totalorder %s32, 0
      %p111 = por %p109, %p110
      %s113 = sadd.s32 %s112, 1
      %p116 = scmp.eq.s32.totalorder %s26, 2
      %p117 = scmp.ne.s32.totalorder %s112, %s114
      %p118 = scmp.eq.s32.totalorder %s26, 0
      %p119 = por %p117, %p118
      %p120 = scmp.ne.s32.totalorder %s112, %s114
      %p121 = scmp.eq.s32.totalorder %s31, 2
      %p122 = por %p120, %p121
      %p123 = scmp.ne.s32.totalorder %s114, %s115
      %p124 = scmp.eq.s32.totalorder %s31, 0
      %p125 = por %p123, %p124
      %p126 = scmp.ne.s32.totalorder %s114, %s115
      %p127 = scmp.eq.s32.totalorder %s32, 2
      %p128 = por %p126, %p127
      %p130 = scmp.ne.s32.totalorder %s115, %s129
      %p131 = scmp.eq.s32.totalorder %s32, 0
      %p132 = por %p130, %p131
      %s134 = sadd.s32 %s133, 1
      %p137 = scmp.eq.s32.totalorder %s26, 2
      %p138 = scmp.ne.s32.totalorder %s133, %s135
      %p139 = scmp.eq.s32.totalorder %s26, 0
      %p140 = por %p138, %p139
      %p141 = scmp.ne.s32.totalorder %s133, %s135
      %p142 = scmp.eq.s32.totalorder %s31, 2
      %p143 = por %p141, %p142
      %p144 = scmp.ne.s32.totalorder %s135, %s136
      %p145 = scmp.eq.s32.totalorder %s31, 0
      %p146 = por %p144, %p145
      %p147 = scmp.ne.s32.totalorder %s135, %s136
      %p148 = scmp.eq.s32.totalorder %s32, 2
      %p149 = por %p147, %p148
      %p151 = scmp.ne.s32.totalorder %s136, %s150
      %p152 = scmp.eq.s32.totalorder %s32, 0
      %p153 = por %p151, %p152
      %s155 = sadd.s32 %s154, 1
      %p158 = scmp.eq.s32.totalorder %s26, 2
      %p159 = scmp.ne.s32.totalorder %s154, %s156
      %p160 = scmp.eq.s32.totalorder %s26, 0
      %p161 = por %p159, %p160
      %p162 = scmp.ne.s32.totalorder %s154, %s156
      %p163 = scmp.eq.s32.totalorder %s31, 2
      %p164 = por %p162, %p163
      %p165 = scmp.ne.s32.totalorder %s156, %s157
      %p166 = scmp.eq.s32.totalorder %s31, 0
      %p167 = por %p165, %p166
      %p168 = scmp.ne.s32.totalorder %s156, %s157
      %p169 = scmp.eq.s32.totalorder %s32, 2
      %p170 = por %p168, %p169
      %p172 = scmp.ne.s32.totalorder %s157, %s171
      %p173 = scmp.eq.s32.totalorder %s32, 0
      %p174 = por %p172, %p173
      %s176 = sadd.s32 %s175, 1
      %p179 = scmp.eq.s32.totalorder %s26, 2
      %p180 = scmp.ne.s32.totalorder %s175, %s177
      %p181 = scmp.eq.s32.totalorder %s26, 0
      %p182 = por %p180, %p181
      %p183 = scmp.ne.s32.totalorder %s175, %s177
      %p184 = scmp.eq.s32.totalorder %s31, 2
      %p185 = por %p183, %p184
      %p186 = scmp.ne.s32.totalorder %s177, %s178
      %p187 = scmp.eq.s32.totalorder %s31, 0
      %p188 = por %p186, %p187
      %p189 = scmp.ne.s32.totalorder %s177, %s178
      %p190 = scmp.eq.s32.totalorder %s32, 2
      %p191 = por %p189, %p190
      %p193 = scmp.ne.s32.totalorder %s178, %s192
      %p194 = scmp.eq.s32.totalorder %s32, 0
      %p195 = por %p193, %p194
      %s197 = sadd.s32 %s196, 1
      %p200 = scmp.eq.s32.totalorder %s26, 2
      %p201 = scmp.ne.s32.totalorder %s196, %s198
      %p202 = scmp.eq.s32.totalorder %s26, 0
      %p203 = por %p201, %p202
      %p204 = scmp.ne.s32.totalorder %s196, %s198
      %p205 = scmp.eq.s32.totalorder %s31, 2
      %p206 = por %p204, %p205
      %p207 = scmp.ne.s32.totalorder %s198, %s199
      %p208 = scmp.eq.s32.totalorder %s31, 0
      %p209 = por %p207, %p208
      %p210 = scmp.ne.s32.totalorder %s198, %s199
      %p211 = scmp.eq.s32.totalorder %s32, 2
      %p212 = por %p210, %p211
      %p214 = scmp.ne.s32.totalorder %s199, %s213
      %p215 = scmp.eq.s32.totalorder %s32, 0
      %p216 = por %p214, %p215
      %s218 = sadd.s32 %s217, 1
      %p221 = scmp.eq.s32.totalorder %s26, 2
      %p222 = scmp.ne.s32.totalorder %s217, %s219
      %p223 = scmp.eq.s32.totalorder %s26, 0
      %p224 = por %p222, %p223
      %p225 = scmp.ne.s32.totalorder %s217, %s219
      %p226 = scmp.eq.s32.totalorder %s31, 2
      %p227 = por %p225, %p226
      %p228 = scmp.ne.s32.totalorder %s219, %s220
      %p229 = scmp.eq.s32.totalorder %s31, 0
      %p230 = por %p228, %p229
      %p231 = scmp.ne.s32.totalorder %s219, %s220
      %p232 = scmp.eq.s32.totalorder %s32, 2
      %p233 = por %p231, %p232
      %p235 = scmp.ne.s32.totalorder %s220, %s234
      %p236 = scmp.eq.s32.totalorder %s32, 0
      %p237 = por %p235, %p236
      %s239 = sadd.s32 %s238, 1
      %p242 = scmp.eq.s32.totalorder %s26, 2
      %p243 = scmp.ne.s32.totalorder %s238, %s240
      %p244 = scmp.eq.s32.totalorder %s26, 0
      %p245 = por %p243, %p244
      %p246 = scmp.ne.s32.totalorder %s238, %s240
      %p247 = scmp.eq.s32.totalorder %s31, 2
      %p248 = por %p246, %p247
      %p249 = scmp.ne.s32.totalorder %s240, %s241
      %p250 = scmp.eq.s32.totalorder %s31, 0
      %p251 = por %p249, %p250
      %p252 = scmp.ne.s32.totalorder %s240, %s241
      %p253 = scmp.eq.s32.totalorder %s32, 2
      %p254 = por %p252, %p253
      %p256 = scmp.ne.s32.totalorder %s241, %s255
      %p257 = scmp.eq.s32.totalorder %s32, 0
      %p258 = por %p256, %p257
      %s259 = ssub.s32 %s26, %s33
      %p260 = scmp.eq.s32.totalorder %s259, 0
      %s262 = sadd.s32 %s261, 1
      %s263 = scalar_select %p260, %s261, %s262
      %p266 = pneg %p260
      %p267 = scmp.eq.s32.totalorder %s26, 2
      %p268 = por %p266, %p267
      %p269 = scmp.ne.s32.totalorder %s261, %s264
      %p270 = scmp.eq.s32.totalorder %s26, 0
      %p271 = por %p269, %p270
      %p272 = scmp.ne.s32.totalorder %s261, %s264
      %p273 = scmp.eq.s32.totalorder %s31, 2
      %p274 = por %p272, %p273
      %p275 = scmp.ne.s32.totalorder %s264, %s265
      %p276 = scmp.eq.s32.totalorder %s31, 0
      %p277 = por %p275, %p276
      %p278 = scmp.ne.s32.totalorder %s264, %s265
      %p279 = scmp.eq.s32.totalorder %s32, 2
      %p280 = por %p278, %p279
      %p282 = scmp.ne.s32.totalorder %s265, %s281
      %p283 = scmp.eq.s32.totalorder %s32, 0
      %p284 = por %p282, %p283
      %p285 = scmp.le.s32.totalorder 1, %s26
      %p286 = scmp.lt.s32.totalorder %s26, 4
      %p287 = pnand %p285, %p286
      %p288 = pneg %p287
      // Predicated region
      $region9: #{tpu_custom_call.1} parent=5 // pred_check
        _
      $region10: #{tpu_custom_call.1} parent=5 // pred_check_branch
        %290 = sbr.rel (%p287) target = $region12
      $region11: #{tpu_custom_call.1} parent=5 // pred_region
        %s291 = ssub.s32 %s26, 1
        // Predicated region
        $region13: #{tpu_custom_call.1} parent=11 // pred_check
          %p292 = pneg %p125
        $region14: #{tpu_custom_call.1} parent=11 // pred_check_branch
          %294 = sbr.rel (%p292) target = $region16
        $region15: #{tpu_custom_call.1} parent=11 // pred_region
          _
        $region16: #{tpu_custom_call.1} parent=11 // pred_fallthru
          _
        // Predicated region
        $region17: #{tpu_custom_call.1} parent=11 // pred_check
          %p295 = pneg %p146
        $region18: #{tpu_custom_call.1} parent=11 // pred_check_branch
          %297 = sbr.rel (%p295) target = $region20
        $region19: #{tpu_custom_call.1} parent=11 // pred_region
          _
        $region20: #{tpu_custom_call.1} parent=11 // pred_fallthru
          _
        // Predicated region
        $region21: #{tpu_custom_call.1} parent=11 // pred_check
          %p298 = pneg %p167
        $region22: #{tpu_custom_call.1} parent=11 // pred_check_branch
          %300 = sbr.rel (%p298) target = $region24
        $region23: #{tpu_custom_call.1} parent=11 // pred_region
          %302 = vsyncadd [#allocation6], 0
          %s303 = sshll.u32 %s5, 4
          %s304 = int_to_ptr.hbm [resolvable:$true] %s303
          %s305 = sshll.u32 [#allocation7], 4
          %s306 = int_to_ptr.vmem [resolvable:$true] %s305
          %311 = dma.hbm_to_vmem [thread:$0]  %s304, 6144, %s306, [#allocation6], 64, 64, 4
        $region24: #{tpu_custom_call.1} parent=11 // pred_fallthru
          _
        // Predicated region
        $region25: #{tpu_custom_call.1} parent=11 // pred_check
          %p312 = pneg %p188
        $region26: #{tpu_custom_call.1} parent=11 // pred_check_branch
          %314 = sbr.rel (%p312) target = $region28
        $region27: #{tpu_custom_call.1} parent=11 // pred_region
          _
        $region28: #{tpu_custom_call.1} parent=11 // pred_fallthru
          _
        // Predicated region
        $region29: #{tpu_custom_call.1} parent=11 // pred_check
          %p315 = pneg %p209
        $region30: #{tpu_custom_call.1} parent=11 // pred_check_branch
          %317 = sbr.rel (%p315) target = $region32
        $region31: #{tpu_custom_call.1} parent=11 // pred_region
          %319 = vsyncadd [#allocation9], 0
          %s320 = sshll.u32 %s7, 4
          %s321 = int_to_ptr.hbm [resolvable:$true] %s320
          %s322 = sshll.u32 [#allocation8], 4
          %s323 = int_to_ptr.vmem [resolvable:$true] %s322
          %328 = dma.hbm_to_vmem [thread:$0]  %s321, 2048, %s323, [#allocation9], 128, 128, 8
        $region32: #{tpu_custom_call.1} parent=11 // pred_fallthru
          _
        // Predicated region
        $region33: #{tpu_custom_call.1} parent=11 // pred_check
          %p329 = pneg %p230
        $region34: #{tpu_custom_call.1} parent=11 // pred_check_branch
          %331 = sbr.rel (%p329) target = $region36
        $region35: #{tpu_custom_call.1} parent=11 // pred_region
          %333 = vsyncadd [#allocation9], 0
          %s334 = sshll.u32 %s8, 4
          %s335 = int_to_ptr.hbm [resolvable:$true] %s334
          %s336 = sshll.u32 [#allocation10], 4
          %s337 = int_to_ptr.vmem [resolvable:$true] %s336
          %342 = dma.hbm_to_vmem [thread:$0]  %s335, 2048, %s337, [#allocation9], 128, 128, 8
        $region36: #{tpu_custom_call.1} parent=11 // pred_fallthru
          _
        // Predicated region
        $region37: #{tpu_custom_call.1} parent=11 // pred_check
          %p343 = pneg %p251
        $region38: #{tpu_custom_call.1} parent=11 // pred_check_branch
          %345 = sbr.rel (%p343) target = $region40
        $region39: #{tpu_custom_call.1} parent=11 // pred_region
          _
        $region40: #{tpu_custom_call.1} parent=11 // pred_fallthru
          _
      $region12: #{tpu_custom_call.1} parent=5 // pred_fallthru
        _
      %p346 = scmp.lt.s32.totalorder %s26, 3
      // Predicated region
      $region41: #{tpu_custom_call.1} parent=5 // pred_check
        %p347 = pneg %p346
      $region42: #{tpu_custom_call.1} parent=5 // pred_check_branch
        %349 = sbr.rel (%p347) target = $region44
      $region43: #{tpu_custom_call.1} parent=5 // pred_region
        // Predicated region
        $region45: #{tpu_custom_call.1} parent=43 // pred_check
          %p350 = pneg %p46
        $region46: #{tpu_custom_call.1} parent=43 // pred_check_branch
          %352 = sbr.rel (%p350) target = $region48
        $region47: #{tpu_custom_call.1} parent=43 // pred_region
          %s353 = sand.u32 %s36, 1
          %s354 = scalar_lea.sflag [#allocation3], %s353
          %s355 = sand.u32 %s36, 1
          %s356 = smul.addr %s355, 384
          %s357 = scalar_lea.vmem [#allocation2], %s356
          %s358 = smul.u32 16, %s26
          %360 = vsyncadd %s354, 0
          %s361 = smul.addr %s358, 6
          %s362 = smul.addr %s361, 4
          %s363 = scalar_lea.hbm %s0, %s362
          %s364 = sshll.u32 %s363, 4
          %s365 = int_to_ptr.hbm [resolvable:$true] %s364
          %s366 = sshll.u32 %s357, 4
          %s367 = int_to_ptr.vmem [resolvable:$true] %s366
          %372 = dma.hbm_to_vmem [thread:$0]  %s365, 6144, %s367, %s354, 384, 384, 24
        $region48: #{tpu_custom_call.1} parent=43 // pred_fallthru
          _
        // Predicated region
        $region49: #{tpu_custom_call.1} parent=43 // pred_check
          %p373 = pneg %p72
        $region50: #{tpu_custom_call.1} parent=43 // pred_check_branch
          %375 = sbr.rel (%p373) target = $region52
        $region51: #{tpu_custom_call.1} parent=43 // pred_region
          %s376 = sand.u32 %s26, 1
          %s377 = scalar_lea.sflag [#allocation6], %s376
          %s378 = sand.u32 %s62, 1
          %s379 = smul.addr %s378, 384
          %s380 = scalar_lea.vmem [#allocation5], %s379
          %s381 = smul.u32 16, %s26
          %383 = vsyncadd %s377, 0
          %s384 = smul.addr %s381, 6
          %s385 = smul.addr %s384, 4
          %s386 = scalar_lea.hbm %s1, %s385
          %s387 = sshll.u32 %s386, 4
          %s388 = int_to_ptr.hbm [resolvable:$true] %s387
          %s389 = sshll.u32 %s380, 4
          %s390 = int_to_ptr.vmem [resolvable:$true] %s389
          %395 = dma.hbm_to_vmem [thread:$0]  %s388, 6144, %s390, %s377, 384, 384, 24
        $region52: #{tpu_custom_call.1} parent=43 // pred_fallthru
          _
        // Predicated region
        $region53: #{tpu_custom_call.1} parent=43 // pred_check
          %p396 = pneg %p98
        $region54: #{tpu_custom_call.1} parent=43 // pred_check_branch
          %398 = sbr.rel (%p396) target = $region56
        $region55: #{tpu_custom_call.1} parent=43 // pred_region
          %s399 = smul.u32 16, %s26
          %p400 = scmp.lt.s32.totalorder %s399, 47
          %s401 = scalar_select %p400, %s399, 47
          %s402 = smul.addr %s401, 8
          %s403 = scalar_lea.vmem %s2, %s402
          %s404 = smul.u32 16, %s26
        $region56: #{tpu_custom_call.1} parent=43 // pred_fallthru
          _
      $region44: #{tpu_custom_call.1} parent=5 // pred_fallthru
        _
      %p405 = scmp.le.s32.totalorder 1, %s26
      %p406 = scmp.lt.s32.totalorder %s26, 4
      %p407 = pnand %p405, %p406
      %p408 = pneg %p407
      // Predicated region
      $region57: #{tpu_custom_call.1} parent=5 // pred_check
        _
      $region58: #{tpu_custom_call.1} parent=5 // pred_check_branch
        %410 = sbr.rel (%p407) target = $region60
      $region59: #{tpu_custom_call.1} parent=5 // pred_region
        %s411 = ssub.s32 %s26, 1
        %s412 = sand.u32 %s39, 1
        %s413 = scalar_lea.sflag [#allocation3], %s412
        %s414 = sand.u32 %s39, 1
        %s415 = smul.addr %s414, 384
        %s416 = scalar_lea.vmem [#allocation2], %s415
        // Predicated region
        $region61: #{tpu_custom_call.1} parent=59 // pred_check
          %p417 = pneg %p52
        $region62: #{tpu_custom_call.1} parent=59 // pred_check_branch
          %419 = sbr.rel (%p417) target = $region64
        $region63: #{tpu_custom_call.1} parent=59 // pred_region
          %421 = dma.done %s413, 6144
        $region64: #{tpu_custom_call.1} parent=59 // pred_fallthru
          _
        %s422 = sand.u32 %s31, 1
        %s423 = scalar_lea.sflag [#allocation6], %s422
        %s424 = sand.u32 %s65, 1
        %s425 = smul.addr %s424, 384
        %s426 = scalar_lea.vmem [#allocation5], %s425
        // Predicated region
        $region65: #{tpu_custom_call.1} parent=59 // pred_check
          %p427 = pneg %p78
        $region66: #{tpu_custom_call.1} parent=59 // pred_check_branch
          %429 = sbr.rel (%p427) target = $region68
        $region67: #{tpu_custom_call.1} parent=59 // pred_region
          %431 = dma.done %s423, 6144
        $region68: #{tpu_custom_call.1} parent=59 // pred_fallthru
          _
        // Predicated region
        $region69: #{tpu_custom_call.1} parent=59 // pred_check
          %p432 = pneg %p167
        $region70: #{tpu_custom_call.1} parent=59 // pred_check_branch
          %434 = sbr.rel (%p432) target = $region72
        $region71: #{tpu_custom_call.1} parent=59 // pred_region
          %436 = dma.done [#allocation6], 6144
        $region72: #{tpu_custom_call.1} parent=59 // pred_fallthru
          _
        // Predicated region
        $region73: #{tpu_custom_call.1} parent=59 // pred_check
          %p437 = pneg %p209
        $region74: #{tpu_custom_call.1} parent=59 // pred_check_branch
          %439 = sbr.rel (%p437) target = $region76
        $region75: #{tpu_custom_call.1} parent=59 // pred_region
          %441 = dma.done [#allocation9], 2048
        $region76: #{tpu_custom_call.1} parent=59 // pred_fallthru
          _
        // Predicated region
        $region77: #{tpu_custom_call.1} parent=59 // pred_check
          %p442 = pneg %p230
        $region78: #{tpu_custom_call.1} parent=59 // pred_check_branch
          %444 = sbr.rel (%p442) target = $region80
        $region79: #{tpu_custom_call.1} parent=59 // pred_region
          %446 = dma.done [#allocation9], 2048
        $region80: #{tpu_custom_call.1} parent=59 // pred_fallthru
          _
        %s447 = sand.u32 %s39, 1
        %s448 = scalar_lea.sflag [#allocation3], %s447
        %s449 = sand.u32 %s39, 1
        %s450 = smul.addr %s449, 384
        %s451 = scalar_lea.vmem [#allocation2], %s450
        %p452 = pneg %p52
        %p453 = pneg %p49
        %s454 = sand.u32 %s31, 1
        %s455 = scalar_lea.sflag [#allocation6], %s454
        %s456 = sand.u32 %s65, 1
        %s457 = smul.addr %s456, 384
        %s458 = scalar_lea.vmem [#allocation5], %s457
        %p459 = pneg %p78
        %p460 = pneg %p75
        %s461 = smul.u32 16, %s31
        %p462 = scmp.lt.s32.totalorder %s461, 47
        %s463 = scalar_select %p462, %s461, 47
        %s464 = smul.addr %s463, 8
        %s465 = scalar_lea.vmem %s2, %s464
        %p466 = pneg %p104
        %p467 = pneg %p101
        %p468 = pneg %p125
        %p469 = pneg %p122
        %p470 = pneg %p146
        %p471 = pneg %p143
        %p472 = pneg %p167
        %p473 = pneg %p164
        %p474 = pneg %p188
        %p475 = pneg %p185
        %p476 = pneg %p209
        %p477 = pneg %p206
        %p478 = pneg %p230
        %p479 = pneg %p227
        %p480 = pneg %p251
        %p481 = pneg %p248
        %p482 = pneg %p277
        %p483 = pneg %p274
        %s484 = sand.u32 %s264, 1
        %s485 = scalar_lea.sflag [#allocation4], %s484
        %s486 = sand.u32 %s264, 1
        %s487 = smul.addr %s486, 128
        %s488 = scalar_lea.vmem [#allocation11], %s487
        %s489 = smul.u32 16, %s31
        %s490 = smul.u32 16, %s31
        %s491 = smul.u32 16, %s31
        %p492 = scmp.lt.s32.totalorder %s491, 47
        %s493 = scalar_select %p492, %s491, 47
        %s494 = smul.addr %s493, 8
        %s495 = scalar_lea.vmem %s2, %s494
        %s496 = smul.u32 16, %s31
        %s497 = smul.u32 16, %s31
        %v498 = vld [vmem:[%s416] sm:$0xff]
        %v499 = vld [vmem:[%s416 + $0x8] sm:$0xff]
        %v500 = vld [vmem:[%s416 + $0x10] sm:$0xff]
        %v501 = vld [vmem:[%s416 + $0x18] sm:$0xff]
        %v502 = vld [vmem:[%s416 + $0x20] sm:$0xff]
        %v503 = vld [vmem:[%s416 + $0x28] sm:$0xff]
        %v504 = vld [vmem:[%s416 + $0x30] sm:$0xff]
        %v505 = vld [vmem:[%s416 + $0x38] sm:$0xff]
        %v506 = vld [vmem:[%s416 + $0x40] sm:$0xff]
        %v507 = vld [vmem:[%s416 + $0x48] sm:$0xff]
        %v508 = vld [vmem:[%s416 + $0x50] sm:$0xff]
        %v509 = vld [vmem:[%s416 + $0x58] sm:$0xff]
        %v510 = vld [vmem:[%s416 + $0x60] sm:$0xff]
        %v511 = vld [vmem:[%s416 + $0x68] sm:$0xff]
        %v512 = vld [vmem:[%s416 + $0x70] sm:$0xff]
        %v513 = vld [vmem:[%s416 + $0x78] sm:$0xff]
        %v514 = vld [vmem:[%s416 + $0x80] sm:$0xff]
        %v515 = vld [vmem:[%s416 + $0x88] sm:$0xff]
        %v516 = vld [vmem:[%s416 + $0x90] sm:$0xff]
        %v517 = vld [vmem:[%s416 + $0x98] sm:$0xff]
        %v518 = vld [vmem:[%s416 + $0xa0] sm:$0xff]
        %v519 = vld [vmem:[%s416 + $0xa8] sm:$0xff]
        %v520 = vld [vmem:[%s416 + $0xb0] sm:$0xff]
        %v521 = vld [vmem:[%s416 + $0xb8] sm:$0xff]
        %v522 = vld [vmem:[%s416 + $0xc0] sm:$0xff]
        %v523 = vld [vmem:[%s416 + $0xc8] sm:$0xff]
        %v524 = vld [vmem:[%s416 + $0xd0] sm:$0xff]
        %v525 = vld [vmem:[%s416 + $0xd8] sm:$0xff]
        %v526 = vld [vmem:[%s416 + $0xe0] sm:$0xff]
        %v527 = vld [vmem:[%s416 + $0xe8] sm:$0xff]
        %v528 = vld [vmem:[%s416 + $0xf0] sm:$0xff]
        %v529 = vld [vmem:[%s416 + $0xf8] sm:$0xff]
        %v530 = vld [vmem:[%s416 + $0x100] sm:$0xff]
        %v531 = vld [vmem:[%s416 + $0x108] sm:$0xff]
        %v532 = vld [vmem:[%s416 + $0x110] sm:$0xff]
        %v533 = vld [vmem:[%s416 + $0x118] sm:$0xff]
        %v534 = vld [vmem:[%s416 + $0x120] sm:$0xff]
        %v535 = vld [vmem:[%s416 + $0x128] sm:$0xff]
        %v536 = vld [vmem:[%s416 + $0x130] sm:$0xff]
        %v537 = vld [vmem:[%s416 + $0x138] sm:$0xff]
        %v538 = vld [vmem:[%s416 + $0x140] sm:$0xff]
        %v539 = vld [vmem:[%s416 + $0x148] sm:$0xff]
        %v540 = vld [vmem:[%s416 + $0x150] sm:$0xff]
        %v541 = vld [vmem:[%s416 + $0x158] sm:$0xff]
        %v542 = vld [vmem:[%s416 + $0x160] sm:$0xff]
        %v543 = vld [vmem:[%s416 + $0x168] sm:$0xff]
        %v544 = vld [vmem:[%s416 + $0x170] sm:$0xff]
        %v545 = vld [vmem:[%s416 + $0x178] sm:$0xff]
        %v546 = vld [vmem:[%s3] sm:$0xf]
        %v547 = vld [vmem:[%s3 + $0x4] sm:$0xf]
        %v548 = vld [vmem:[%s3 + $0x8] sm:$0xf]
        %v549 = vld [vmem:[%s3 + $0xc] sm:$0xf]
        %v550 = vld [vmem:[%s3 + $0x10] sm:$0xf]
        %v551 = vld [vmem:[%s3 + $0x14] sm:$0xf]
        %v552 = vld [vmem:[%s3 + $0x18] sm:$0xf]
        %v553 = vld [vmem:[%s3 + $0x1c] sm:$0xf]
        %v554 = vld [vmem:[%s3 + $0x20] sm:$0xf]
        %v555 = vld [vmem:[%s3 + $0x24] sm:$0xf]
        %v556 = vld [vmem:[%s3 + $0x28] sm:$0xf]
        %v557 = vld [vmem:[%s3 + $0x2c] sm:$0xf]
        %v558 = vld [vmem:[%s3 + $0x30] sm:$0xf]
        %v559 = vld [vmem:[%s3 + $0x34] sm:$0xf]
        %v560 = vld [vmem:[%s3 + $0x38] sm:$0xf]
        %v561 = vld [vmem:[%s3 + $0x3c] sm:$0xf]
        %v562 = vld [vmem:[%s3 + $0x40] sm:$0xf]
        %v563 = vld [vmem:[%s3 + $0x44] sm:$0xf]
        %v564 = vld [vmem:[%s3 + $0x48] sm:$0xf]
        %v565 = vld [vmem:[%s3 + $0x4c] sm:$0xf]
        %v566 = vld [vmem:[%s3 + $0x50] sm:$0xf]
        %v567 = vld [vmem:[%s3 + $0x54] sm:$0xf]
        %v568 = vld [vmem:[%s3 + $0x58] sm:$0xf]
        %v569 = vld [vmem:[%s3 + $0x5c] sm:$0xf]
        %v570 = vld [vmem:[%s3 + $0x60] sm:$0xf]
        %v571 = vld [vmem:[%s3 + $0x64] sm:$0xf]
        %v572 = vld [vmem:[%s3 + $0x68] sm:$0xf]
        %v573 = vld [vmem:[%s3 + $0x6c] sm:$0xf]
        %v574 = vld [vmem:[%s3 + $0x70] sm:$0xf]
        %v575 = vld [vmem:[%s3 + $0x74] sm:$0xf]
        %v576 = vld [vmem:[%s3 + $0x78] sm:$0xf]
        %v577 = vld [vmem:[%s3 + $0x7c] sm:$0xf]
        %v578 = vld [vmem:[%s3 + $0x80] sm:$0xf]
        %v579 = vld [vmem:[%s3 + $0x84] sm:$0xf]
        %v580 = vld [vmem:[%s3 + $0x88] sm:$0xf]
        %v581 = vld [vmem:[%s3 + $0x8c] sm:$0xf]
        %v582 = vld [vmem:[%s3 + $0x90] sm:$0xf]
        %v583 = vld [vmem:[%s3 + $0x94] sm:$0xf]
        %v584 = vld [vmem:[%s3 + $0x98] sm:$0xf]
        %v585 = vld [vmem:[%s3 + $0x9c] sm:$0xf]
        %v586 = vld [vmem:[%s3 + $0xa0] sm:$0xf]
        %v587 = vld [vmem:[%s3 + $0xa4] sm:$0xf]
        %v588 = vld [vmem:[%s3 + $0xa8] sm:$0xf]
        %v589 = vld [vmem:[%s3 + $0xac] sm:$0xf]
        %v590 = vld [vmem:[%s3 + $0xb0] sm:$0xf]
        %v591 = vld [vmem:[%s3 + $0xb4] sm:$0xf]
        %v592 = vld [vmem:[%s3 + $0xb8] sm:$0xf]
        %v593 = vld [vmem:[%s3 + $0xbc] sm:$0xf]
        %v594 = vld [vmem:[%s3 + $0xc0] sm:$0xf]
        %v595 = vld [vmem:[%s3 + $0xc4] sm:$0xf]
        %v596 = vld [vmem:[%s3 + $0xc8] sm:$0xf]
        %v597 = vld [vmem:[%s3 + $0xcc] sm:$0xf]
        %v598 = vld [vmem:[%s3 + $0xd0] sm:$0xf]
        %v599 = vld [vmem:[%s3 + $0xd4] sm:$0xf]
        %v600 = vld [vmem:[%s3 + $0xd8] sm:$0xf]
        %v601 = vld [vmem:[%s3 + $0xdc] sm:$0xf]
        %v602 = vld [vmem:[%s3 + $0xe0] sm:$0xf]
        %v603 = vld [vmem:[%s3 + $0xe4] sm:$0xf]
        %v604 = vld [vmem:[%s3 + $0xe8] sm:$0xf]
        %v605 = vld [vmem:[%s3 + $0xec] sm:$0xf]
        %v606 = vld [vmem:[%s3 + $0xf0] sm:$0xf]
        %v607 = vld [vmem:[%s3 + $0xf4] sm:$0xf]
        %v608 = vld [vmem:[%s3 + $0xf8] sm:$0xf]
        %v609 = vld [vmem:[%s3 + $0xfc] sm:$0xf]
        %v610 = vld [vmem:[%s3 + $0x100] sm:$0xf]
        %v611 = vld [vmem:[%s3 + $0x104] sm:$0xf]
        %v612 = vld [vmem:[%s3 + $0x108] sm:$0xf]
        %v613 = vld [vmem:[%s3 + $0x10c] sm:$0xf]
        %v614 = vld [vmem:[%s3 + $0x110] sm:$0xf]
        %v615 = vld [vmem:[%s3 + $0x114] sm:$0xf]
        %v616 = vld [vmem:[%s3 + $0x118] sm:$0xf]
        %v617 = vld [vmem:[%s3 + $0x11c] sm:$0xf]
        %v618 = vld [vmem:[%s3 + $0x120] sm:$0xf]
        %v619 = vld [vmem:[%s3 + $0x124] sm:$0xf]
        %v620 = vld [vmem:[%s3 + $0x128] sm:$0xf]
        %v621 = vld [vmem:[%s3 + $0x12c] sm:$0xf]
        %v622 = vld [vmem:[%s3 + $0x130] sm:$0xf]
        %v623 = vld [vmem:[%s3 + $0x134] sm:$0xf]
        %v624 = vld [vmem:[%s3 + $0x138] sm:$0xf]
        %v625 = vld [vmem:[%s3 + $0x13c] sm:$0xf]
        %v626 = vld [vmem:[%s3 + $0x140] sm:$0xf]
        %v627 = vld [vmem:[%s3 + $0x144] sm:$0xf]
        %v628 = vld [vmem:[%s3 + $0x148] sm:$0xf]
        %v629 = vld [vmem:[%s3 + $0x14c] sm:$0xf]
        %v630 = vld [vmem:[%s3 + $0x150] sm:$0xf]
        %v631 = vld [vmem:[%s3 + $0x154] sm:$0xf]
        %v632 = vld [vmem:[%s3 + $0x158] sm:$0xf]
        %v633 = vld [vmem:[%s3 + $0x15c] sm:$0xf]
        %v634 = vld [vmem:[%s3 + $0x160] sm:$0xf]
        %v635 = vld [vmem:[%s3 + $0x164] sm:$0xf]
        %v636 = vld [vmem:[%s3 + $0x168] sm:$0xf]
        %v637 = vld [vmem:[%s3 + $0x16c] sm:$0xf]
        %v638 = vld [vmem:[%s3 + $0x170] sm:$0xf]
        %v639 = vld [vmem:[%s3 + $0x174] sm:$0xf]
        %v640 = vld [vmem:[%s3 + $0x178] sm:$0xf]
        %v641 = vld [vmem:[%s3 + $0x17c] sm:$0xf]
        %v642 = vld [vmem:[%s4] sm:$0x1]
        %v644 = vperm.slane %v642, 0
        %v694 = vunpack.c.l.b16 %v498
        %v695 = vunpack.c.h.b16 %v498
        %v696 = vunpack.c.l.b16 %v499
        %v697 = vunpack.c.h.b16 %v499
        %v698 = vunpack.c.l.b16 %v500
        %v699 = vunpack.c.h.b16 %v500
        %v700 = vunpack.c.l.b16 %v501
        %v701 = vunpack.c.h.b16 %v501
        %v702 = vunpack.c.l.b16 %v502
        %v703 = vunpack.c.h.b16 %v502
        %v704 = vunpack.c.l.b16 %v503
        %v705 = vunpack.c.h.b16 %v503
        %v706 = vunpack.c.l.b16 %v504
        %v707 = vunpack.c.h.b16 %v504
        %v708 = vunpack.c.l.b16 %v505
        %v709 = vunpack.c.h.b16 %v505
        %v710 = vunpack.c.l.b16 %v506
        %v711 = vunpack.c.h.b16 %v506
        %v712 = vunpack.c.l.b16 %v507
        %v713 = vunpack.c.h.b16 %v507
        %v714 = vunpack.c.l.b16 %v508
        %v715 = vunpack.c.h.b16 %v508
        %v716 = vunpack.c.l.b16 %v509
        %v717 = vunpack.c.h.b16 %v509
        %v718 = vunpack.c.l.b16 %v510
        %v719 = vunpack.c.h.b16 %v510
        %v720 = vunpack.c.l.b16 %v511
        %v721 = vunpack.c.h.b16 %v511
        %v722 = vunpack.c.l.b16 %v512
        %v723 = vunpack.c.h.b16 %v512
        %v724 = vunpack.c.l.b16 %v513
        %v725 = vunpack.c.h.b16 %v513
        %v726 = vunpack.c.l.b16 %v514
        %v727 = vunpack.c.h.b16 %v514
        %v728 = vunpack.c.l.b16 %v515
        %v729 = vunpack.c.h.b16 %v515
        %v730 = vunpack.c.l.b16 %v516
        %v731 = vunpack.c.h.b16 %v516
        %v732 = vunpack.c.l.b16 %v517
        %v733 = vunpack.c.h.b16 %v517
        %v734 = vunpack.c.l.b16 %v518
        %v735 = vunpack.c.h.b16 %v518
        %v736 = vunpack.c.l.b16 %v519
        %v737 = vunpack.c.h.b16 %v519
        %v738 = vunpack.c.l.b16 %v520
        %v739 = vunpack.c.h.b16 %v520
        %v740 = vunpack.c.l.b16 %v521
        %v741 = vunpack.c.h.b16 %v521
        %v742 = vunpack.c.l.b16 %v522
        %v743 = vunpack.c.h.b16 %v522
        %v744 = vunpack.c.l.b16 %v523
        %v745 = vunpack.c.h.b16 %v523
        %v746 = vunpack.c.l.b16 %v524
        %v747 = vunpack.c.h.b16 %v524
        %v748 = vunpack.c.l.b16 %v525
        %v749 = vunpack.c.h.b16 %v525
        %v750 = vunpack.c.l.b16 %v526
        %v751 = vunpack.c.h.b16 %v526
        %v752 = vunpack.c.l.b16 %v527
        %v753 = vunpack.c.h.b16 %v527
        %v754 = vunpack.c.l.b16 %v528
        %v755 = vunpack.c.h.b16 %v528
        %v756 = vunpack.c.l.b16 %v529
        %v757 = vunpack.c.h.b16 %v529
        %v758 = vunpack.c.l.b16 %v530
        %v759 = vunpack.c.h.b16 %v530
        %v760 = vunpack.c.l.b16 %v531
        %v761 = vunpack.c.h.b16 %v531
        %v762 = vunpack.c.l.b16 %v532
        %v763 = vunpack.c.h.b16 %v532
        %v764 = vunpack.c.l.b16 %v533
        %v765 = vunpack.c.h.b16 %v533
        %v766 = vunpack.c.l.b16 %v534
        %v767 = vunpack.c.h.b16 %v534
        %v768 = vunpack.c.l.b16 %v535
        %v769 = vunpack.c.h.b16 %v535
        %v770 = vunpack.c.l.b16 %v536
        %v771 = vunpack.c.h.b16 %v536
        %v772 = vunpack.c.l.b16 %v537
        %v773 = vunpack.c.h.b16 %v537
        %v774 = vunpack.c.l.b16 %v538
        %v775 = vunpack.c.h.b16 %v538
        %v776 = vunpack.c.l.b16 %v539
        %v777 = vunpack.c.h.b16 %v539
        %v778 = vunpack.c.l.b16 %v540
        %v779 = vunpack.c.h.b16 %v540
        %v780 = vunpack.c.l.b16 %v541
        %v781 = vunpack.c.h.b16 %v541
        %v782 = vunpack.c.l.b16 %v542
        %v783 = vunpack.c.h.b16 %v542
        %v784 = vunpack.c.l.b16 %v543
        %v785 = vunpack.c.h.b16 %v543
        %v786 = vunpack.c.l.b16 %v544
        %v787 = vunpack.c.h.b16 %v544
        %v788 = vunpack.c.l.b16 %v545
        %v789 = vunpack.c.h.b16 %v545
        %v790 = vpack.c.b16 %v700, %v694
        %v791 = vpack.c.b16 %v701, %v695
        %v792 = vpack.c.b16 %v702, %v696
        %v793 = vpack.c.b16 %v703, %v697
        %v794 = vpack.c.b16 %v704, %v698
        %v795 = vpack.c.b16 %v705, %v699
        %v796 = vpack.c.b16 %v712, %v706
        %v797 = vpack.c.b16 %v713, %v707
        %v798 = vpack.c.b16 %v714, %v708
        %v799 = vpack.c.b16 %v715, %v709
        %v800 = vpack.c.b16 %v716, %v710
        %v801 = vpack.c.b16 %v717, %v711
        %v802 = vpack.c.b16 %v724, %v718
        %v803 = vpack.c.b16 %v725, %v719
        %v804 = vpack.c.b16 %v726, %v720
        %v805 = vpack.c.b16 %v727, %v721
        %v806 = vpack.c.b16 %v728, %v722
        %v807 = vpack.c.b16 %v729, %v723
        %v808 = vpack.c.b16 %v736, %v730
        %v809 = vpack.c.b16 %v737, %v731
        %v810 = vpack.c.b16 %v738, %v732
        %v811 = vpack.c.b16 %v739, %v733
        %v812 = vpack.c.b16 %v740, %v734
        %v813 = vpack.c.b16 %v741, %v735
        %v814 = vpack.c.b16 %v748, %v742
        %v815 = vpack.c.b16 %v749, %v743
        %v816 = vpack.c.b16 %v750, %v744
        %v817 = vpack.c.b16 %v751, %v745
        %v818 = vpack.c.b16 %v752, %v746
        %v819 = vpack.c.b16 %v753, %v747
        %v820 = vpack.c.b16 %v760, %v754
        %v821 = vpack.c.b16 %v761, %v755
        %v822 = vpack.c.b16 %v762, %v756
        %v823 = vpack.c.b16 %v763, %v757
        %v824 = vpack.c.b16 %v764, %v758
        %v825 = vpack.c.b16 %v765, %v759
        %v826 = vpack.c.b16 %v772, %v766
        %v827 = vpack.c.b16 %v773, %v767
        %v828 = vpack.c.b16 %v774, %v768
        %v829 = vpack.c.b16 %v775, %v769
        %v830 = vpack.c.b16 %v776, %v770
        %v831 = vpack.c.b16 %v777, %v771
        %v832 = vpack.c.b16 %v784, %v778
        %v833 = vpack.c.b16 %v785, %v779
        %v834 = vpack.c.b16 %v786, %v780
        %v835 = vpack.c.b16 %v787, %v781
        %v836 = vpack.c.b16 %v788, %v782
        %v837 = vpack.c.b16 %v789, %v783
        %v982 = vunpack.c.l.b16 %v546
        %v983 = vunpack.c.l.b16 %v547
        %v984 = vunpack.c.l.b16 %v548
        %v985 = vunpack.c.l.b16 %v549
        %v986 = vunpack.c.l.b16 %v550
        %v987 = vunpack.c.l.b16 %v551
        %v988 = vunpack.c.l.b16 %v552
        %v989 = vunpack.c.l.b16 %v553
        %v990 = vunpack.c.l.b16 %v554
        %v991 = vunpack.c.l.b16 %v555
        %v992 = vunpack.c.l.b16 %v556
        %v993 = vunpack.c.l.b16 %v557
        %v994 = vunpack.c.l.b16 %v558
        %v995 = vunpack.c.l.b16 %v559
        %v996 = vunpack.c.l.b16 %v560
        %v997 = vunpack.c.l.b16 %v561
        %v998 = vunpack.c.l.b16 %v562
        %v999 = vunpack.c.l.b16 %v563
        %v1000 = vunpack.c.l.b16 %v564
        %v1001 = vunpack.c.l.b16 %v565
        %v1002 = vunpack.c.l.b16 %v566
        %v1003 = vunpack.c.l.b16 %v567
        %v1004 = vunpack.c.l.b16 %v568
        %v1005 = vunpack.c.l.b16 %v569
        %v1006 = vunpack.c.l.b16 %v570
        %v1007 = vunpack.c.l.b16 %v571
        %v1008 = vunpack.c.l.b16 %v572
        %v1009 = vunpack.c.l.b16 %v573
        %v1010 = vunpack.c.l.b16 %v574
        %v1011 = vunpack.c.l.b16 %v575
        %v1012 = vunpack.c.l.b16 %v576
        %v1013 = vunpack.c.l.b16 %v577
        %v1014 = vunpack.c.l.b16 %v578
        %v1015 = vunpack.c.l.b16 %v579
        %v1016 = vunpack.c.l.b16 %v580
        %v1017 = vunpack.c.l.b16 %v581
        %v1018 = vunpack.c.l.b16 %v582
        %v1019 = vunpack.c.l.b16 %v583
        %v1020 = vunpack.c.l.b16 %v584
        %v1021 = vunpack.c.l.b16 %v585
        %v1022 = vunpack.c.l.b16 %v586
        %v1023 = vunpack.c.l.b16 %v587
        %v1024 = vunpack.c.l.b16 %v588
        %v1025 = vunpack.c.l.b16 %v589
        %v1026 = vunpack.c.l.b16 %v590
        %v1027 = vunpack.c.l.b16 %v591
        %v1028 = vunpack.c.l.b16 %v592
        %v1029 = vunpack.c.l.b16 %v593
        %v1030 = vunpack.c.l.b16 %v594
        %v1031 = vunpack.c.l.b16 %v595
        %v1032 = vunpack.c.l.b16 %v596
        %v1033 = vunpack.c.l.b16 %v597
        %v1034 = vunpack.c.l.b16 %v598
        %v1035 = vunpack.c.l.b16 %v599
        %v1036 = vunpack.c.l.b16 %v600
        %v1037 = vunpack.c.l.b16 %v601
        %v1038 = vunpack.c.l.b16 %v602
        %v1039 = vunpack.c.l.b16 %v603
        %v1040 = vunpack.c.l.b16 %v604
        %v1041 = vunpack.c.l.b16 %v605
        %v1042 = vunpack.c.l.b16 %v606
        %v1043 = vunpack.c.l.b16 %v607
        %v1044 = vunpack.c.l.b16 %v608
        %v1045 = vunpack.c.l.b16 %v609
        %v1046 = vunpack.c.l.b16 %v610
        %v1047 = vunpack.c.l.b16 %v611
        %v1048 = vunpack.c.l.b16 %v612
        %v1049 = vunpack.c.l.b16 %v613
        %v1050 = vunpack.c.l.b16 %v614
        %v1051 = vunpack.c.l.b16 %v615
        %v1052 = vunpack.c.l.b16 %v616
        %v1053 = vunpack.c.l.b16 %v617
        %v1054 = vunpack.c.l.b16 %v618
        %v1055 = vunpack.c.l.b16 %v619
        %v1056 = vunpack.c.l.b16 %v620
        %v1057 = vunpack.c.l.b16 %v621
        %v1058 = vunpack.c.l.b16 %v622
        %v1059 = vunpack.c.l.b16 %v623
        %v1060 = vunpack.c.l.b16 %v624
        %v1061 = vunpack.c.l.b16 %v625
        %v1062 = vunpack.c.l.b16 %v626
        %v1063 = vunpack.c.l.b16 %v627
        %v1064 = vunpack.c.l.b16 %v628
        %v1065 = vunpack.c.l.b16 %v629
        %v1066 = vunpack.c.l.b16 %v630
        %v1067 = vunpack.c.l.b16 %v631
        %v1068 = vunpack.c.l.b16 %v632
        %v1069 = vunpack.c.l.b16 %v633
        %v1070 = vunpack.c.l.b16 %v634
        %v1071 = vunpack.c.l.b16 %v635
        %v1072 = vunpack.c.l.b16 %v636
        %v1073 = vunpack.c.l.b16 %v637
        %v1074 = vunpack.c.l.b16 %v638
        %v1075 = vunpack.c.l.b16 %v639
        %v1076 = vunpack.c.l.b16 %v640
        %v1077 = vunpack.c.l.b16 %v641
        %v1078 = vpack.c.b16 %v983, %v982
        %v1079 = vpack.c.b16 %v985, %v984
        %v1080 = vpack.c.b16 %v987, %v986
        %v1081 = vpack.c.b16 %v989, %v988
        %v1082 = vpack.c.b16 %v991, %v990
        %v1083 = vpack.c.b16 %v993, %v992
        %v1084 = vpack.c.b16 %v995, %v994
        %v1085 = vpack.c.b16 %v997, %v996
        %v1086 = vpack.c.b16 %v999, %v998
        %v1087 = vpack.c.b16 %v1001, %v1000
        %v1088 = vpack.c.b16 %v1003, %v1002
        %v1089 = vpack.c.b16 %v1005, %v1004
        %v1090 = vpack.c.b16 %v1007, %v1006
        %v1091 = vpack.c.b16 %v1009, %v1008
        %v1092 = vpack.c.b16 %v1011, %v1010
        %v1093 = vpack.c.b16 %v1013, %v1012
        %v1094 = vpack.c.b16 %v1015, %v1014
        %v1095 = vpack.c.b16 %v1017, %v1016
        %v1096 = vpack.c.b16 %v1019, %v1018
        %v1097 = vpack.c.b16 %v1021, %v1020
        %v1098 = vpack.c.b16 %v1023, %v1022
        %v1099 = vpack.c.b16 %v1025, %v1024
        %v1100 = vpack.c.b16 %v1027, %v1026
        %v1101 = vpack.c.b16 %v1029, %v1028
        %v1102 = vpack.c.b16 %v1031, %v1030
        %v1103 = vpack.c.b16 %v1033, %v1032
        %v1104 = vpack.c.b16 %v1035, %v1034
        %v1105 = vpack.c.b16 %v1037, %v1036
        %v1106 = vpack.c.b16 %v1039, %v1038
        %v1107 = vpack.c.b16 %v1041, %v1040
        %v1108 = vpack.c.b16 %v1043, %v1042
        %v1109 = vpack.c.b16 %v1045, %v1044
        %v1110 = vpack.c.b16 %v1047, %v1046
        %v1111 = vpack.c.b16 %v1049, %v1048
        %v1112 = vpack.c.b16 %v1051, %v1050
        %v1113 = vpack.c.b16 %v1053, %v1052
        %v1114 = vpack.c.b16 %v1055, %v1054
        %v1115 = vpack.c.b16 %v1057, %v1056
        %v1116 = vpack.c.b16 %v1059, %v1058
        %v1117 = vpack.c.b16 %v1061, %v1060
        %v1118 = vpack.c.b16 %v1063, %v1062
        %v1119 = vpack.c.b16 %v1065, %v1064
        %v1120 = vpack.c.b16 %v1067, %v1066
        %v1121 = vpack.c.b16 %v1069, %v1068
        %v1122 = vpack.c.b16 %v1071, %v1070
        %v1123 = vpack.c.b16 %v1073, %v1072
        %v1124 = vpack.c.b16 %v1075, %v1074
        %v1125 = vpack.c.b16 %v1077, %v1076
        %1174 = vmatpush.bf16.msra.mxu0 %v1085
        %1175 = vmatpush.bf16.msra.mxu0 %v1084
        %1176 = vmatpush.bf16.msra.mxu0 %v1083
        %1177 = vmatpush.bf16.msra.mxu0 %v1082
        %1178 = vmatpush.bf16.msra.mxu0 %v1081
        %1179 = vmatpush.bf16.msra.mxu0 %v1080
        %1180 = vmatpush.bf16.msra.mxu0 %v1079
        %1181 = vmatpush.bf16.msra.mxu0 %v1078
        %1182 = vmatmul.bf16.gmra.mxu0 %v790
        %v1183 = vpop.f32.mrf.mxu0
        %v1184 = vadd.f32 %v644, %v1183
        %v1185 = vpop.f32.mrf.mxu0
        %v1186 = vadd.f32 %v644, %v1185
        %1187 = vmatmul.bf16.gmra.mxu0 %v796
        %v1188 = vpop.f32.mrf.mxu0
        %v1189 = vadd.f32 %v644, %v1188
        %v1190 = vpop.f32.mrf.mxu0
        %v1191 = vadd.f32 %v644, %v1190
        %1192 = vmatmul.bf16.gmra.mxu0 %v802
        %v1193 = vpop.f32.mrf.mxu0
        %v1194 = vadd.f32 %v644, %v1193
        %v1195 = vpop.f32.mrf.mxu0
        %v1196 = vadd.f32 %v644, %v1195
        %1197 = vmatmul.bf16.gmra.mxu0 %v808
        %v1198 = vpop.f32.mrf.mxu0
        %v1199 = vadd.f32 %v644, %v1198
        %v1200 = vpop.f32.mrf.mxu0
        %v1201 = vadd.f32 %v644, %v1200
        %1202 = vmatmul.bf16.gmra.mxu0 %v814
        %v1203 = vpop.f32.mrf.mxu0
        %v1204 = vadd.f32 %v644, %v1203
        %v1205 = vpop.f32.mrf.mxu0
        %v1206 = vadd.f32 %v644, %v1205
        %1207 = vmatmul.bf16.gmra.mxu0 %v820
        %v1208 = vpop.f32.mrf.mxu0
        %v1209 = vadd.f32 %v644, %v1208
        %v1210 = vpop.f32.mrf.mxu0
        %v1211 = vadd.f32 %v644, %v1210
        %1212 = vmatmul.bf16.gmra.mxu0 %v826
        %v1213 = vpop.f32.mrf.mxu0
        %v1214 = vadd.f32 %v644, %v1213
        %v1215 = vpop.f32.mrf.mxu0
        %v1216 = vadd.f32 %v644, %v1215
        %1217 = vmatmul.bf16.gmra.mxu0 %v832
        %v1218 = vpop.f32.mrf.mxu0
        %v1219 = vadd.f32 %v644, %v1218
        %v1220 = vpop.f32.mrf.mxu0
        %v1221 = vadd.f32 %v644, %v1220
        %1222 = vdwg.mxu0
        %1223 = vmatpush.bf16.msra.mxu0 %v1093
        %1224 = vmatpush.bf16.msra.mxu0 %v1092
        %1225 = vmatpush.bf16.msra.mxu0 %v1091
        %1226 = vmatpush.bf16.msra.mxu0 %v1090
        %1227 = vmatpush.bf16.msra.mxu0 %v1089
        %1228 = vmatpush.bf16.msra.mxu0 %v1088
        %1229 = vmatpush.bf16.msra.mxu0 %v1087
        %1230 = vmatpush.bf16.msra.mxu0 %v1086
        %1231 = vmatmul.bf16.gmra.mxu0 %v791
        %v1232 = vpop.f32.mrf.mxu0
        %v1233 = vadd.f32 %v1184, %v1232
        %v1234 = vpop.f32.mrf.mxu0
        %v1235 = vadd.f32 %v1186, %v1234
        %1236 = vmatmul.bf16.gmra.mxu0 %v797
        %v1237 = vpop.f32.mrf.mxu0
        %v1238 = vadd.f32 %v1189, %v1237
        %v1239 = vpop.f32.mrf.mxu0
        %v1240 = vadd.f32 %v1191, %v1239
        %1241 = vmatmul.bf16.gmra.mxu0 %v803
        %v1242 = vpop.f32.mrf.mxu0
        %v1243 = vadd.f32 %v1194, %v1242
        %v1244 = vpop.f32.mrf.mxu0
        %v1245 = vadd.f32 %v1196, %v1244
        %1246 = vmatmul.bf16.gmra.mxu0 %v809
        %v1247 = vpop.f32.mrf.mxu0
        %v1248 = vadd.f32 %v1199, %v1247
        %v1249 = vpop.f32.mrf.mxu0
        %v1250 = vadd.f32 %v1201, %v1249
        %1251 = vmatmul.bf16.gmra.mxu0 %v815
        %v1252 = vpop.f32.mrf.mxu0
        %v1253 = vadd.f32 %v1204, %v1252
        %v1254 = vpop.f32.mrf.mxu0
        %v1255 = vadd.f32 %v1206, %v1254
        %1256 = vmatmul.bf16.gmra.mxu0 %v821
        %v1257 = vpop.f32.mrf.mxu0
        %v1258 = vadd.f32 %v1209, %v1257
        %v1259 = vpop.f32.mrf.mxu0
        %v1260 = vadd.f32 %v1211, %v1259
        %1261 = vmatmul.bf16.gmra.mxu0 %v827
        %v1262 = vpop.f32.mrf.mxu0
        %v1263 = vadd.f32 %v1214, %v1262
        %v1264 = vpop.f32.mrf.mxu0
        %v1265 = vadd.f32 %v1216, %v1264
        %1266 = vmatmul.bf16.gmra.mxu0 %v833
        %v1267 = vpop.f32.mrf.mxu0
        %v1268 = vadd.f32 %v1219, %v1267
        %v1269 = vpop.f32.mrf.mxu0
        %v1270 = vadd.f32 %v1221, %v1269
        %1271 = vdwg.mxu0
        %1272 = vmatpush.bf16.msra.mxu0 %v1101
        %1273 = vmatpush.bf16.msra.mxu0 %v1100
        %1274 = vmatpush.bf16.msra.mxu0 %v1099
        %1275 = vmatpush.bf16.msra.mxu0 %v1098
        %1276 = vmatpush.bf16.msra.mxu0 %v1097
        %1277 = vmatpush.bf16.msra.mxu0 %v1096
        %1278 = vmatpush.bf16.msra.mxu0 %v1095
        %1279 = vmatpush.bf16.msra.mxu0 %v1094
        %1280 = vmatmul.bf16.gmra.mxu0 %v792
        %v1281 = vpop.f32.mrf.mxu0
        %v1282 = vadd.f32 %v1233, %v1281
        %v1283 = vpop.f32.mrf.mxu0
        %v1284 = vadd.f32 %v1235, %v1283
        %1285 = vmatmul.bf16.gmra.mxu0 %v798
        %v1286 = vpop.f32.mrf.mxu0
        %v1287 = vadd.f32 %v1238, %v1286
        %v1288 = vpop.f32.mrf.mxu0
        %v1289 = vadd.f32 %v1240, %v1288
        %1290 = vmatmul.bf16.gmra.mxu0 %v804
        %v1291 = vpop.f32.mrf.mxu0
        %v1292 = vadd.f32 %v1243, %v1291
        %v1293 = vpop.f32.mrf.mxu0
        %v1294 = vadd.f32 %v1245, %v1293
        %1295 = vmatmul.bf16.gmra.mxu0 %v810
        %v1296 = vpop.f32.mrf.mxu0
        %v1297 = vadd.f32 %v1248, %v1296
        %v1298 = vpop.f32.mrf.mxu0
        %v1299 = vadd.f32 %v1250, %v1298
        %1300 = vmatmul.bf16.gmra.mxu0 %v816
        %v1301 = vpop.f32.mrf.mxu0
        %v1302 = vadd.f32 %v1253, %v1301
        %v1303 = vpop.f32.mrf.mxu0
        %v1304 = vadd.f32 %v1255, %v1303
        %1305 = vmatmul.bf16.gmra.mxu0 %v822
        %v1306 = vpop.f32.mrf.mxu0
        %v1307 = vadd.f32 %v1258, %v1306
        %v1308 = vpop.f32.mrf.mxu0
        %v1309 = vadd.f32 %v1260, %v1308
        %1310 = vmatmul.bf16.gmra.mxu0 %v828
        %v1311 = vpop.f32.mrf.mxu0
        %v1312 = vadd.f32 %v1263, %v1311
        %v1313 = vpop.f32.mrf.mxu0
        %v1314 = vadd.f32 %v1265, %v1313
        %1315 = vmatmul.bf16.gmra.mxu0 %v834
        %v1316 = vpop.f32.mrf.mxu0
        %v1317 = vadd.f32 %v1268, %v1316
        %v1318 = vpop.f32.mrf.mxu0
        %v1319 = vadd.f32 %v1270, %v1318
        %1320 = vdwg.mxu0
        %1321 = vmatpush.bf16.msra.mxu0 %v1109
        %1322 = vmatpush.bf16.msra.mxu0 %v1108
        %1323 = vmatpush.bf16.msra.mxu0 %v1107
        %1324 = vmatpush.bf16.msra.mxu0 %v1106
        %1325 = vmatpush.bf16.msra.mxu0 %v1105
        %1326 = vmatpush.bf16.msra.mxu0 %v1104
        %1327 = vmatpush.bf16.msra.mxu0 %v1103
        %1328 = vmatpush.bf16.msra.mxu0 %v1102
        %1329 = vmatmul.bf16.gmra.mxu0 %v793
        %v1330 = vpop.f32.mrf.mxu0
        %v1331 = vadd.f32 %v1282, %v1330
        %v1332 = vpop.f32.mrf.mxu0
        %v1333 = vadd.f32 %v1284, %v1332
        %1334 = vmatmul.bf16.gmra.mxu0 %v799
        %v1335 = vpop.f32.mrf.mxu0
        %v1336 = vadd.f32 %v1287, %v1335
        %v1337 = vpop.f32.mrf.mxu0
        %v1338 = vadd.f32 %v1289, %v1337
        %1339 = vmatmul.bf16.gmra.mxu0 %v805
        %v1340 = vpop.f32.mrf.mxu0
        %v1341 = vadd.f32 %v1292, %v1340
        %v1342 = vpop.f32.mrf.mxu0
        %v1343 = vadd.f32 %v1294, %v1342
        %1344 = vmatmul.bf16.gmra.mxu0 %v811
        %v1345 = vpop.f32.mrf.mxu0
        %v1346 = vadd.f32 %v1297, %v1345
        %v1347 = vpop.f32.mrf.mxu0
        %v1348 = vadd.f32 %v1299, %v1347
        %1349 = vmatmul.bf16.gmra.mxu0 %v817
        %v1350 = vpop.f32.mrf.mxu0
        %v1351 = vadd.f32 %v1302, %v1350
        %v1352 = vpop.f32.mrf.mxu0
        %v1353 = vadd.f32 %v1304, %v1352
        %1354 = vmatmul.bf16.gmra.mxu0 %v823
        %v1355 = vpop.f32.mrf.mxu0
        %v1356 = vadd.f32 %v1307, %v1355
        %v1357 = vpop.f32.mrf.mxu0
        %v1358 = vadd.f32 %v1309, %v1357
        %1359 = vmatmul.bf16.gmra.mxu0 %v829
        %v1360 = vpop.f32.mrf.mxu0
        %v1361 = vadd.f32 %v1312, %v1360
        %v1362 = vpop.f32.mrf.mxu0
        %v1363 = vadd.f32 %v1314, %v1362
        %1364 = vmatmul.bf16.gmra.mxu0 %v835
        %v1365 = vpop.f32.mrf.mxu0
        %v1366 = vadd.f32 %v1317, %v1365
        %v1367 = vpop.f32.mrf.mxu0
        %v1368 = vadd.f32 %v1319, %v1367
        %1369 = vdwg.mxu0
        %1370 = vmatpush.bf16.msra.mxu0 %v1117
        %1371 = vmatpush.bf16.msra.mxu0 %v1116
        %1372 = vmatpush.bf16.msra.mxu0 %v1115
        %1373 = vmatpush.bf16.msra.mxu0 %v1114
        %1374 = vmatpush.bf16.msra.mxu0 %v1113
        %1375 = vmatpush.bf16.msra.mxu0 %v1112
        %1376 = vmatpush.bf16.msra.mxu0 %v1111
        %1377 = vmatpush.bf16.msra.mxu0 %v1110
        %1378 = vmatmul.bf16.gmra.mxu0 %v794
        %v1379 = vpop.f32.mrf.mxu0
        %v1380 = vadd.f32 %v1331, %v1379
        %v1381 = vpop.f32.mrf.mxu0
        %v1382 = vadd.f32 %v1333, %v1381
        %1383 = vmatmul.bf16.gmra.mxu0 %v800
        %v1384 = vpop.f32.mrf.mxu0
        %v1385 = vadd.f32 %v1336, %v1384
        %v1386 = vpop.f32.mrf.mxu0
        %v1387 = vadd.f32 %v1338, %v1386
        %1388 = vmatmul.bf16.gmra.mxu0 %v806
        %v1389 = vpop.f32.mrf.mxu0
        %v1390 = vadd.f32 %v1341, %v1389
        %v1391 = vpop.f32.mrf.mxu0
        %v1392 = vadd.f32 %v1343, %v1391
        %1393 = vmatmul.bf16.gmra.mxu0 %v812
        %v1394 = vpop.f32.mrf.mxu0
        %v1395 = vadd.f32 %v1346, %v1394
        %v1396 = vpop.f32.mrf.mxu0
        %v1397 = vadd.f32 %v1348, %v1396
        %1398 = vmatmul.bf16.gmra.mxu0 %v818
        %v1399 = vpop.f32.mrf.mxu0
        %v1400 = vadd.f32 %v1351, %v1399
        %v1401 = vpop.f32.mrf.mxu0
        %v1402 = vadd.f32 %v1353, %v1401
        %1403 = vmatmul.bf16.gmra.mxu0 %v824
        %v1404 = vpop.f32.mrf.mxu0
        %v1405 = vadd.f32 %v1356, %v1404
        %v1406 = vpop.f32.mrf.mxu0
        %v1407 = vadd.f32 %v1358, %v1406
        %1408 = vmatmul.bf16.gmra.mxu0 %v830
        %v1409 = vpop.f32.mrf.mxu0
        %v1410 = vadd.f32 %v1361, %v1409
        %v1411 = vpop.f32.mrf.mxu0
        %v1412 = vadd.f32 %v1363, %v1411
        %1413 = vmatmul.bf16.gmra.mxu0 %v836
        %v1414 = vpop.f32.mrf.mxu0
        %v1415 = vadd.f32 %v1366, %v1414
        %v1416 = vpop.f32.mrf.mxu0
        %v1417 = vadd.f32 %v1368, %v1416
        %1418 = vdwg.mxu0
        %1419 = vmatpush.bf16.msra.mxu0 %v1125
        %1420 = vmatpush.bf16.msra.mxu0 %v1124
        %1421 = vmatpush.bf16.msra.mxu0 %v1123
        %1422 = vmatpush.bf16.msra.mxu0 %v1122
        %1423 = vmatpush.bf16.msra.mxu0 %v1121
        %1424 = vmatpush.bf16.msra.mxu0 %v1120
        %1425 = vmatpush.bf16.msra.mxu0 %v1119
        %1426 = vmatpush.bf16.msra.mxu0 %v1118
        %1427 = vmatmul.bf16.gmra.mxu0 %v795
        %v1428 = vpop.f32.mrf.mxu0
        %v1429 = vadd.f32 %v1380, %v1428
        %v1430 = vpop.f32.mrf.mxu0
        %v1431 = vadd.f32 %v1382, %v1430
        %1432 = vmatmul.bf16.gmra.mxu0 %v801
        %v1433 = vpop.f32.mrf.mxu0
        %v1434 = vadd.f32 %v1385, %v1433
        %v1435 = vpop.f32.mrf.mxu0
        %v1436 = vadd.f32 %v1387, %v1435
        %1437 = vmatmul.bf16.gmra.mxu0 %v807
        %v1438 = vpop.f32.mrf.mxu0
        %v1439 = vadd.f32 %v1390, %v1438
        %v1440 = vpop.f32.mrf.mxu0
        %v1441 = vadd.f32 %v1392, %v1440
        %1442 = vmatmul.bf16.gmra.mxu0 %v813
        %v1443 = vpop.f32.mrf.mxu0
        %v1444 = vadd.f32 %v1395, %v1443
        %v1445 = vpop.f32.mrf.mxu0
        %v1446 = vadd.f32 %v1397, %v1445
        %1447 = vmatmul.bf16.gmra.mxu0 %v819
        %v1448 = vpop.f32.mrf.mxu0
        %v1449 = vadd.f32 %v1400, %v1448
        %v1450 = vpop.f32.mrf.mxu0
        %v1451 = vadd.f32 %v1402, %v1450
        %1452 = vmatmul.bf16.gmra.mxu0 %v825
        %v1453 = vpop.f32.mrf.mxu0
        %v1454 = vadd.f32 %v1405, %v1453
        %v1455 = vpop.f32.mrf.mxu0
        %v1456 = vadd.f32 %v1407, %v1455
        %1457 = vmatmul.bf16.gmra.mxu0 %v831
        %v1458 = vpop.f32.mrf.mxu0
        %v1459 = vadd.f32 %v1410, %v1458
        %v1460 = vpop.f32.mrf.mxu0
        %v1461 = vadd.f32 %v1412, %v1460
        %1462 = vmatmul.bf16.gmra.mxu0 %v837
        %v1463 = vpop.f32.mrf.mxu0
        %v1464 = vadd.f32 %v1415, %v1463
        %v1465 = vpop.f32.mrf.mxu0
        %v1466 = vadd.f32 %v1417, %v1465
        %1467 = vdwg.mxu0
        %v1468 = vld [vmem:[%s426] sm:$0xff]
        %v1469 = vld [vmem:[%s426 + $0x8] sm:$0xff]
        %v1470 = vld [vmem:[%s426 + $0x10] sm:$0xff]
        %v1471 = vld [vmem:[%s426 + $0x18] sm:$0xff]
        %v1472 = vld [vmem:[%s426 + $0x20] sm:$0xff]
        %v1473 = vld [vmem:[%s426 + $0x28] sm:$0xff]
        %v1474 = vld [vmem:[%s426 + $0x30] sm:$0xff]
        %v1475 = vld [vmem:[%s426 + $0x38] sm:$0xff]
        %v1476 = vld [vmem:[%s426 + $0x40] sm:$0xff]
        %v1477 = vld [vmem:[%s426 + $0x48] sm:$0xff]
        %v1478 = vld [vmem:[%s426 + $0x50] sm:$0xff]
        %v1479 = vld [vmem:[%s426 + $0x58] sm:$0xff]
        %v1480 = vld [vmem:[%s426 + $0x60] sm:$0xff]
        %v1481 = vld [vmem:[%s426 + $0x68] sm:$0xff]
        %v1482 = vld [vmem:[%s426 + $0x70] sm:$0xff]
        %v1483 = vld [vmem:[%s426 + $0x78] sm:$0xff]
        %v1484 = vld [vmem:[%s426 + $0x80] sm:$0xff]
        %v1485 = vld [vmem:[%s426 + $0x88] sm:$0xff]
        %v1486 = vld [vmem:[%s426 + $0x90] sm:$0xff]
        %v1487 = vld [vmem:[%s426 + $0x98] sm:$0xff]
        %v1488 = vld [vmem:[%s426 + $0xa0] sm:$0xff]
        %v1489 = vld [vmem:[%s426 + $0xa8] sm:$0xff]
        %v1490 = vld [vmem:[%s426 + $0xb0] sm:$0xff]
        %v1491 = vld [vmem:[%s426 + $0xb8] sm:$0xff]
        %v1492 = vld [vmem:[%s426 + $0xc0] sm:$0xff]
        %v1493 = vld [vmem:[%s426 + $0xc8] sm:$0xff]
        %v1494 = vld [vmem:[%s426 + $0xd0] sm:$0xff]
        %v1495 = vld [vmem:[%s426 + $0xd8] sm:$0xff]
        %v1496 = vld [vmem:[%s426 + $0xe0] sm:$0xff]
        %v1497 = vld [vmem:[%s426 + $0xe8] sm:$0xff]
        %v1498 = vld [vmem:[%s426 + $0xf0] sm:$0xff]
        %v1499 = vld [vmem:[%s426 + $0xf8] sm:$0xff]
        %v1500 = vld [vmem:[%s426 + $0x100] sm:$0xff]
        %v1501 = vld [vmem:[%s426 + $0x108] sm:$0xff]
        %v1502 = vld [vmem:[%s426 + $0x110] sm:$0xff]
        %v1503 = vld [vmem:[%s426 + $0x118] sm:$0xff]
        %v1504 = vld [vmem:[%s426 + $0x120] sm:$0xff]
        %v1505 = vld [vmem:[%s426 + $0x128] sm:$0xff]
        %v1506 = vld [vmem:[%s426 + $0x130] sm:$0xff]
        %v1507 = vld [vmem:[%s426 + $0x138] sm:$0xff]
        %v1508 = vld [vmem:[%s426 + $0x140] sm:$0xff]
        %v1509 = vld [vmem:[%s426 + $0x148] sm:$0xff]
        %v1510 = vld [vmem:[%s426 + $0x150] sm:$0xff]
        %v1511 = vld [vmem:[%s426 + $0x158] sm:$0xff]
        %v1512 = vld [vmem:[%s426 + $0x160] sm:$0xff]
        %v1513 = vld [vmem:[%s426 + $0x168] sm:$0xff]
        %v1514 = vld [vmem:[%s426 + $0x170] sm:$0xff]
        %v1515 = vld [vmem:[%s426 + $0x178] sm:$0xff]
        %v1516 = vld [vmem:[#allocation7] sm:$0xf]
        %v1517 = vld [vmem:[#allocation7 + $0x4] sm:$0xf]
        %v1518 = vld [vmem:[#allocation7 + $0x8] sm:$0xf]
        %v1519 = vld [vmem:[#allocation7 + $0xc] sm:$0xf]
        %v1520 = vld [vmem:[#allocation7 + $0x10] sm:$0xf]
        %v1521 = vld [vmem:[#allocation7 + $0x14] sm:$0xf]
        %v1522 = vld [vmem:[#allocation7 + $0x18] sm:$0xf]
        %v1523 = vld [vmem:[#allocation7 + $0x1c] sm:$0xf]
        %v1524 = vld [vmem:[#allocation7 + $0x20] sm:$0xf]
        %v1525 = vld [vmem:[#allocation7 + $0x24] sm:$0xf]
        %v1526 = vld [vmem:[#allocation7 + $0x28] sm:$0xf]
        %v1527 = vld [vmem:[#allocation7 + $0x2c] sm:$0xf]
        %v1528 = vld [vmem:[#allocation7 + $0x30] sm:$0xf]
        %v1529 = vld [vmem:[#allocation7 + $0x34] sm:$0xf]
        %v1530 = vld [vmem:[#allocation7 + $0x38] sm:$0xf]
        %v1531 = vld [vmem:[#allocation7 + $0x3c] sm:$0xf]
        %v1532 = vld [vmem:[#allocation7 + $0x40] sm:$0xf]
        %v1533 = vld [vmem:[#allocation7 + $0x44] sm:$0xf]
        %v1534 = vld [vmem:[#allocation7 + $0x48] sm:$0xf]
        %v1535 = vld [vmem:[#allocation7 + $0x4c] sm:$0xf]
        %v1536 = vld [vmem:[#allocation7 + $0x50] sm:$0xf]
        %v1537 = vld [vmem:[#allocation7 + $0x54] sm:$0xf]
        %v1538 = vld [vmem:[#allocation7 + $0x58] sm:$0xf]
        %v1539 = vld [vmem:[#allocation7 + $0x5c] sm:$0xf]
        %v1540 = vld [vmem:[#allocation7 + $0x60] sm:$0xf]
        %v1541 = vld [vmem:[#allocation7 + $0x64] sm:$0xf]
        %v1542 = vld [vmem:[#allocation7 + $0x68] sm:$0xf]
        %v1543 = vld [vmem:[#allocation7 + $0x6c] sm:$0xf]
        %v1544 = vld [vmem:[#allocation7 + $0x70] sm:$0xf]
        %v1545 = vld [vmem:[#allocation7 + $0x74] sm:$0xf]
        %v1546 = vld [vmem:[#allocation7 + $0x78] sm:$0xf]
        %v1547 = vld [vmem:[#allocation7 + $0x7c] sm:$0xf]
        %v1548 = vld [vmem:[#allocation7 + $0x80] sm:$0xf]
        %v1549 = vld [vmem:[#allocation7 + $0x84] sm:$0xf]
        %v1550 = vld [vmem:[#allocation7 + $0x88] sm:$0xf]
        %v1551 = vld [vmem:[#allocation7 + $0x8c] sm:$0xf]
        %v1552 = vld [vmem:[#allocation7 + $0x90] sm:$0xf]
        %v1553 = vld [vmem:[#allocation7 + $0x94] sm:$0xf]
        %v1554 = vld [vmem:[#allocation7 + $0x98] sm:$0xf]
        %v1555 = vld [vmem:[#allocation7 + $0x9c] sm:$0xf]
        %v1556 = vld [vmem:[#allocation7 + $0xa0] sm:$0xf]
        %v1557 = vld [vmem:[#allocation7 + $0xa4] sm:$0xf]
        %v1558 = vld [vmem:[#allocation7 + $0xa8] sm:$0xf]
        %v1559 = vld [vmem:[#allocation7 + $0xac] sm:$0xf]
        %v1560 = vld [vmem:[#allocation7 + $0xb0] sm:$0xf]
        %v1561 = vld [vmem:[#allocation7 + $0xb4] sm:$0xf]
        %v1562 = vld [vmem:[#allocation7 + $0xb8] sm:$0xf]
        %v1563 = vld [vmem:[#allocation7 + $0xbc] sm:$0xf]
        %v1564 = vld [vmem:[#allocation7 + $0xc0] sm:$0xf]
        %v1565 = vld [vmem:[#allocation7 + $0xc4] sm:$0xf]
        %v1566 = vld [vmem:[#allocation7 + $0xc8] sm:$0xf]
        %v1567 = vld [vmem:[#allocation7 + $0xcc] sm:$0xf]
        %v1568 = vld [vmem:[#allocation7 + $0xd0] sm:$0xf]
        %v1569 = vld [vmem:[#allocation7 + $0xd4] sm:$0xf]
        %v1570 = vld [vmem:[#allocation7 + $0xd8] sm:$0xf]
        %v1571 = vld [vmem:[#allocation7 + $0xdc] sm:$0xf]
        %v1572 = vld [vmem:[#allocation7 + $0xe0] sm:$0xf]
        %v1573 = vld [vmem:[#allocation7 + $0xe4] sm:$0xf]
        %v1574 = vld [vmem:[#allocation7 + $0xe8] sm:$0xf]
        %v1575 = vld [vmem:[#allocation7 + $0xec] sm:$0xf]
        %v1576 = vld [vmem:[#allocation7 + $0xf0] sm:$0xf]
        %v1577 = vld [vmem:[#allocation7 + $0xf4] sm:$0xf]
        %v1578 = vld [vmem:[#allocation7 + $0xf8] sm:$0xf]
        %v1579 = vld [vmem:[#allocation7 + $0xfc] sm:$0xf]
        %v1580 = vld [vmem:[#allocation7 + $0x100] sm:$0xf]
        %v1581 = vld [vmem:[#allocation7 + $0x104] sm:$0xf]
        %v1582 = vld [vmem:[#allocation7 + $0x108] sm:$0xf]
        %v1583 = vld [vmem:[#allocation7 + $0x10c] sm:$0xf]
        %v1584 = vld [vmem:[#allocation7 + $0x110] sm:$0xf]
        %v1585 = vld [vmem:[#allocation7 + $0x114] sm:$0xf]
        %v1586 = vld [vmem:[#allocation7 + $0x118] sm:$0xf]
        %v1587 = vld [vmem:[#allocation7 + $0x11c] sm:$0xf]
        %v1588 = vld [vmem:[#allocation7 + $0x120] sm:$0xf]
        %v1589 = vld [vmem:[#allocation7 + $0x124] sm:$0xf]
        %v1590 = vld [vmem:[#allocation7 + $0x128] sm:$0xf]
        %v1591 = vld [vmem:[#allocation7 + $0x12c] sm:$0xf]
        %v1592 = vld [vmem:[#allocation7 + $0x130] sm:$0xf]
        %v1593 = vld [vmem:[#allocation7 + $0x134] sm:$0xf]
        %v1594 = vld [vmem:[#allocation7 + $0x138] sm:$0xf]
        %v1595 = vld [vmem:[#allocation7 + $0x13c] sm:$0xf]
        %v1596 = vld [vmem:[#allocation7 + $0x140] sm:$0xf]
        %v1597 = vld [vmem:[#allocation7 + $0x144] sm:$0xf]
        %v1598 = vld [vmem:[#allocation7 + $0x148] sm:$0xf]
        %v1599 = vld [vmem:[#allocation7 + $0x14c] sm:$0xf]
        %v1600 = vld [vmem:[#allocation7 + $0x150] sm:$0xf]
        %v1601 = vld [vmem:[#allocation7 + $0x154] sm:$0xf]
        %v1602 = vld [vmem:[#allocation7 + $0x158] sm:$0xf]
        %v1603 = vld [vmem:[#allocation7 + $0x15c] sm:$0xf]
        %v1604 = vld [vmem:[#allocation7 + $0x160] sm:$0xf]
        %v1605 = vld [vmem:[#allocation7 + $0x164] sm:$0xf]
        %v1606 = vld [vmem:[#allocation7 + $0x168] sm:$0xf]
        %v1607 = vld [vmem:[#allocation7 + $0x16c] sm:$0xf]
        %v1608 = vld [vmem:[#allocation7 + $0x170] sm:$0xf]
        %v1609 = vld [vmem:[#allocation7 + $0x174] sm:$0xf]
        %v1610 = vld [vmem:[#allocation7 + $0x178] sm:$0xf]
        %v1611 = vld [vmem:[#allocation7 + $0x17c] sm:$0xf]
        %v1612 = vld [vmem:[%s6] sm:$0x1]
        %v1614 = vperm.slane %v1612, 0
        %v1664 = vunpack.c.l.b16 %v1468
        %v1665 = vunpack.c.h.b16 %v1468
        %v1666 = vunpack.c.l.b16 %v1469
        %v1667 = vunpack.c.h.b16 %v1469
        %v1668 = vunpack.c.l.b16 %v1470
        %v1669 = vunpack.c.h.b16 %v1470
        %v1670 = vunpack.c.l.b16 %v1471
        %v1671 = vunpack.c.h.b16 %v1471
        %v1672 = vunpack.c.l.b16 %v1472
        %v1673 = vunpack.c.h.b16 %v1472
        %v1674 = vunpack.c.l.b16 %v1473
        %v1675 = vunpack.c.h.b16 %v1473
        %v1676 = vunpack.c.l.b16 %v1474
        %v1677 = vunpack.c.h.b16 %v1474
        %v1678 = vunpack.c.l.b16 %v1475
        %v1679 = vunpack.c.h.b16 %v1475
        %v1680 = vunpack.c.l.b16 %v1476
        %v1681 = vunpack.c.h.b16 %v1476
        %v1682 = vunpack.c.l.b16 %v1477
        %v1683 = vunpack.c.h.b16 %v1477
        %v1684 = vunpack.c.l.b16 %v1478
        %v1685 = vunpack.c.h.b16 %v1478
        %v1686 = vunpack.c.l.b16 %v1479
        %v1687 = vunpack.c.h.b16 %v1479
        %v1688 = vunpack.c.l.b16 %v1480
        %v1689 = vunpack.c.h.b16 %v1480
        %v1690 = vunpack.c.l.b16 %v1481
        %v1691 = vunpack.c.h.b16 %v1481
        %v1692 = vunpack.c.l.b16 %v1482
        %v1693 = vunpack.c.h.b16 %v1482
        %v1694 = vunpack.c.l.b16 %v1483
        %v1695 = vunpack.c.h.b16 %v1483
        %v1696 = vunpack.c.l.b16 %v1484
        %v1697 = vunpack.c.h.b16 %v1484
        %v1698 = vunpack.c.l.b16 %v1485
        %v1699 = vunpack.c.h.b16 %v1485
        %v1700 = vunpack.c.l.b16 %v1486
        %v1701 = vunpack.c.h.b16 %v1486
        %v1702 = vunpack.c.l.b16 %v1487
        %v1703 = vunpack.c.h.b16 %v1487
        %v1704 = vunpack.c.l.b16 %v1488
        %v1705 = vunpack.c.h.b16 %v1488
        %v1706 = vunpack.c.l.b16 %v1489
        %v1707 = vunpack.c.h.b16 %v1489
        %v1708 = vunpack.c.l.b16 %v1490
        %v1709 = vunpack.c.h.b16 %v1490
        %v1710 = vunpack.c.l.b16 %v1491
        %v1711 = vunpack.c.h.b16 %v1491
        %v1712 = vunpack.c.l.b16 %v1492
        %v1713 = vunpack.c.h.b16 %v1492
        %v1714 = vunpack.c.l.b16 %v1493
        %v1715 = vunpack.c.h.b16 %v1493
        %v1716 = vunpack.c.l.b16 %v1494
        %v1717 = vunpack.c.h.b16 %v1494
        %v1718 = vunpack.c.l.b16 %v1495
        %v1719 = vunpack.c.h.b16 %v1495
        %v1720 = vunpack.c.l.b16 %v1496
        %v1721 = vunpack.c.h.b16 %v1496
        %v1722 = vunpack.c.l.b16 %v1497
        %v1723 = vunpack.c.h.b16 %v1497
        %v1724 = vunpack.c.l.b16 %v1498
        %v1725 = vunpack.c.h.b16 %v1498
        %v1726 = vunpack.c.l.b16 %v1499
        %v1727 = vunpack.c.h.b16 %v1499
        %v1728 = vunpack.c.l.b16 %v1500
        %v1729 = vunpack.c.h.b16 %v1500
        %v1730 = vunpack.c.l.b16 %v1501
        %v1731 = vunpack.c.h.b16 %v1501
        %v1732 = vunpack.c.l.b16 %v1502
        %v1733 = vunpack.c.h.b16 %v1502
        %v1734 = vunpack.c.l.b16 %v1503
        %v1735 = vunpack.c.h.b16 %v1503
        %v1736 = vunpack.c.l.b16 %v1504
        %v1737 = vunpack.c.h.b16 %v1504
        %v1738 = vunpack.c.l.b16 %v1505
        %v1739 = vunpack.c.h.b16 %v1505
        %v1740 = vunpack.c.l.b16 %v1506
        %v1741 = vunpack.c.h.b16 %v1506
        %v1742 = vunpack.c.l.b16 %v1507
        %v1743 = vunpack.c.h.b16 %v1507
        %v1744 = vunpack.c.l.b16 %v1508
        %v1745 = vunpack.c.h.b16 %v1508
        %v1746 = vunpack.c.l.b16 %v1509
        %v1747 = vunpack.c.h.b16 %v1509
        %v1748 = vunpack.c.l.b16 %v1510
        %v1749 = vunpack.c.h.b16 %v1510
        %v1750 = vunpack.c.l.b16 %v1511
        %v1751 = vunpack.c.h.b16 %v1511
        %v1752 = vunpack.c.l.b16 %v1512
        %v1753 = vunpack.c.h.b16 %v1512
        %v1754 = vunpack.c.l.b16 %v1513
        %v1755 = vunpack.c.h.b16 %v1513
        %v1756 = vunpack.c.l.b16 %v1514
        %v1757 = vunpack.c.h.b16 %v1514
        %v1758 = vunpack.c.l.b16 %v1515
        %v1759 = vunpack.c.h.b16 %v1515
        %v1760 = vpack.c.b16 %v1670, %v1664
        %v1761 = vpack.c.b16 %v1671, %v1665
        %v1762 = vpack.c.b16 %v1672, %v1666
        %v1763 = vpack.c.b16 %v1673, %v1667
        %v1764 = vpack.c.b16 %v1674, %v1668
        %v1765 = vpack.c.b16 %v1675, %v1669
        %v1766 = vpack.c.b16 %v1682, %v1676
        %v1767 = vpack.c.b16 %v1683, %v1677
        %v1768 = vpack.c.b16 %v1684, %v1678
        %v1769 = vpack.c.b16 %v1685, %v1679
        %v1770 = vpack.c.b16 %v1686, %v1680
        %v1771 = vpack.c.b16 %v1687, %v1681
        %v1772 = vpack.c.b16 %v1694, %v1688
        %v1773 = vpack.c.b16 %v1695, %v1689
        %v1774 = vpack.c.b16 %v1696, %v1690
        %v1775 = vpack.c.b16 %v1697, %v1691
        %v1776 = vpack.c.b16 %v1698, %v1692
        %v1777 = vpack.c.b16 %v1699, %v1693
        %v1778 = vpack.c.b16 %v1706, %v1700
        %v1779 = vpack.c.b16 %v1707, %v1701
        %v1780 = vpack.c.b16 %v1708, %v1702
        %v1781 = vpack.c.b16 %v1709, %v1703
        %v1782 = vpack.c.b16 %v1710, %v1704
        %v1783 = vpack.c.b16 %v1711, %v1705
        %v1784 = vpack.c.b16 %v1718, %v1712
        %v1785 = vpack.c.b16 %v1719, %v1713
        %v1786 = vpack.c.b16 %v1720, %v1714
        %v1787 = vpack.c.b16 %v1721, %v1715
        %v1788 = vpack.c.b16 %v1722, %v1716
        %v1789 = vpack.c.b16 %v1723, %v1717
        %v1790 = vpack.c.b16 %v1730, %v1724
        %v1791 = vpack.c.b16 %v1731, %v1725
        %v1792 = vpack.c.b16 %v1732, %v1726
        %v1793 = vpack.c.b16 %v1733, %v1727
        %v1794 = vpack.c.b16 %v1734, %v1728
        %v1795 = vpack.c.b16 %v1735, %v1729
        %v1796 = vpack.c.b16 %v1742, %v1736
        %v1797 = vpack.c.b16 %v1743, %v1737
        %v1798 = vpack.c.b16 %v1744, %v1738
        %v1799 = vpack.c.b16 %v1745, %v1739
        %v1800 = vpack.c.b16 %v1746, %v1740
        %v1801 = vpack.c.b16 %v1747, %v1741
        %v1802 = vpack.c.b16 %v1754, %v1748
        %v1803 = vpack.c.b16 %v1755, %v1749
        %v1804 = vpack.c.b16 %v1756, %v1750
        %v1805 = vpack.c.b16 %v1757, %v1751
        %v1806 = vpack.c.b16 %v1758, %v1752
        %v1807 = vpack.c.b16 %v1759, %v1753
        %v1952 = vunpack.c.l.b16 %v1516
        %v1953 = vunpack.c.l.b16 %v1517
        %v1954 = vunpack.c.l.b16 %v1518
        %v1955 = vunpack.c.l.b16 %v1519
        %v1956 = vunpack.c.l.b16 %v1520
        %v1957 = vunpack.c.l.b16 %v1521
        %v1958 = vunpack.c.l.b16 %v1522
        %v1959 = vunpack.c.l.b16 %v1523
        %v1960 = vunpack.c.l.b16 %v1524
        %v1961 = vunpack.c.l.b16 %v1525
        %v1962 = vunpack.c.l.b16 %v1526
        %v1963 = vunpack.c.l.b16 %v1527
        %v1964 = vunpack.c.l.b16 %v1528
        %v1965 = vunpack.c.l.b16 %v1529
        %v1966 = vunpack.c.l.b16 %v1530
        %v1967 = vunpack.c.l.b16 %v1531
        %v1968 = vunpack.c.l.b16 %v1532
        %v1969 = vunpack.c.l.b16 %v1533
        %v1970 = vunpack.c.l.b16 %v1534
        %v1971 = vunpack.c.l.b16 %v1535
        %v1972 = vunpack.c.l.b16 %v1536
        %v1973 = vunpack.c.l.b16 %v1537
        %v1974 = vunpack.c.l.b16 %v1538
        %v1975 = vunpack.c.l.b16 %v1539
        %v1976 = vunpack.c.l.b16 %v1540
        %v1977 = vunpack.c.l.b16 %v1541
        %v1978 = vunpack.c.l.b16 %v1542
        %v1979 = vunpack.c.l.b16 %v1543
        %v1980 = vunpack.c.l.b16 %v1544
        %v1981 = vunpack.c.l.b16 %v1545
        %v1982 = vunpack.c.l.b16 %v1546
        %v1983 = vunpack.c.l.b16 %v1547
        %v1984 = vunpack.c.l.b16 %v1548
        %v1985 = vunpack.c.l.b16 %v1549
        %v1986 = vunpack.c.l.b16 %v1550
        %v1987 = vunpack.c.l.b16 %v1551
        %v1988 = vunpack.c.l.b16 %v1552
        %v1989 = vunpack.c.l.b16 %v1553
        %v1990 = vunpack.c.l.b16 %v1554
        %v1991 = vunpack.c.l.b16 %v1555
        %v1992 = vunpack.c.l.b16 %v1556
        %v1993 = vunpack.c.l.b16 %v1557
        %v1994 = vunpack.c.l.b16 %v1558
        %v1995 = vunpack.c.l.b16 %v1559
        %v1996 = vunpack.c.l.b16 %v1560
        %v1997 = vunpack.c.l.b16 %v1561
        %v1998 = vunpack.c.l.b16 %v1562
        %v1999 = vunpack.c.l.b16 %v1563
        %v2000 = vunpack.c.l.b16 %v1564
        %v2001 = vunpack.c.l.b16 %v1565
        %v2002 = vunpack.c.l.b16 %v1566
        %v2003 = vunpack.c.l.b16 %v1567
        %v2004 = vunpack.c.l.b16 %v1568
        %v2005 = vunpack.c.l.b16 %v1569
        %v2006 = vunpack.c.l.b16 %v1570
        %v2007 = vunpack.c.l.b16 %v1571
        %v2008 = vunpack.c.l.b16 %v1572
        %v2009 = vunpack.c.l.b16 %v1573
        %v2010 = vunpack.c.l.b16 %v1574
        %v2011 = vunpack.c.l.b16 %v1575
        %v2012 = vunpack.c.l.b16 %v1576
        %v2013 = vunpack.c.l.b16 %v1577
        %v2014 = vunpack.c.l.b16 %v1578
        %v2015 = vunpack.c.l.b16 %v1579
        %v2016 = vunpack.c.l.b16 %v1580
        %v2017 = vunpack.c.l.b16 %v1581
        %v2018 = vunpack.c.l.b16 %v1582
        %v2019 = vunpack.c.l.b16 %v1583
        %v2020 = vunpack.c.l.b16 %v1584
        %v2021 = vunpack.c.l.b16 %v1585
        %v2022 = vunpack.c.l.b16 %v1586
        %v2023 = vunpack.c.l.b16 %v1587
        %v2024 = vunpack.c.l.b16 %v1588
        %v2025 = vunpack.c.l.b16 %v1589
        %v2026 = vunpack.c.l.b16 %v1590
        %v2027 = vunpack.c.l.b16 %v1591
        %v2028 = vunpack.c.l.b16 %v1592
        %v2029 = vunpack.c.l.b16 %v1593
        %v2030 = vunpack.c.l.b16 %v1594
        %v2031 = vunpack.c.l.b16 %v1595
        %v2032 = vunpack.c.l.b16 %v1596
        %v2033 = vunpack.c.l.b16 %v1597
        %v2034 = vunpack.c.l.b16 %v1598
        %v2035 = vunpack.c.l.b16 %v1599
        %v2036 = vunpack.c.l.b16 %v1600
        %v2037 = vunpack.c.l.b16 %v1601
        %v2038 = vunpack.c.l.b16 %v1602
        %v2039 = vunpack.c.l.b16 %v1603
        %v2040 = vunpack.c.l.b16 %v1604
        %v2041 = vunpack.c.l.b16 %v1605
        %v2042 = vunpack.c.l.b16 %v1606
        %v2043 = vunpack.c.l.b16 %v1607
        %v2044 = vunpack.c.l.b16 %v1608
        %v2045 = vunpack.c.l.b16 %v1609
        %v2046 = vunpack.c.l.b16 %v1610
        %v2047 = vunpack.c.l.b16 %v1611
        %v2048 = vpack.c.b16 %v1953, %v1952
        %v2049 = vpack.c.b16 %v1955, %v1954
        %v2050 = vpack.c.b16 %v1957, %v1956
        %v2051 = vpack.c.b16 %v1959, %v1958
        %v2052 = vpack.c.b16 %v1961, %v1960
        %v2053 = vpack.c.b16 %v1963, %v1962
        %v2054 = vpack.c.b16 %v1965, %v1964
        %v2055 = vpack.c.b16 %v1967, %v1966
        %v2056 = vpack.c.b16 %v1969, %v1968
        %v2057 = vpack.c.b16 %v1971, %v1970
        %v2058 = vpack.c.b16 %v1973, %v1972
        %v2059 = vpack.c.b16 %v1975, %v1974
        %v2060 = vpack.c.b16 %v1977, %v1976
        %v2061 = vpack.c.b16 %v1979, %v1978
        %v2062 = vpack.c.b16 %v1981, %v1980
        %v2063 = vpack.c.b16 %v1983, %v1982
        %v2064 = vpack.c.b16 %v1985, %v1984
        %v2065 = vpack.c.b16 %v1987, %v1986
        %v2066 = vpack.c.b16 %v1989, %v1988
        %v2067 = vpack.c.b16 %v1991, %v1990
        %v2068 = vpack.c.b16 %v1993, %v1992
        %v2069 = vpack.c.b16 %v1995, %v1994
        %v2070 = vpack.c.b16 %v1997, %v1996
        %v2071 = vpack.c.b16 %v1999, %v1998
        %v2072 = vpack.c.b16 %v2001, %v2000
        %v2073 = vpack.c.b16 %v2003, %v2002
        %v2074 = vpack.c.b16 %v2005, %v2004
        %v2075 = vpack.c.b16 %v2007, %v2006
        %v2076 = vpack.c.b16 %v2009, %v2008
        %v2077 = vpack.c.b16 %v2011, %v2010
        %v2078 = vpack.c.b16 %v2013, %v2012
        %v2079 = vpack.c.b16 %v2015, %v2014
        %v2080 = vpack.c.b16 %v2017, %v2016
        %v2081 = vpack.c.b16 %v2019, %v2018
        %v2082 = vpack.c.b16 %v2021, %v2020
        %v2083 = vpack.c.b16 %v2023, %v2022
        %v2084 = vpack.c.b16 %v2025, %v2024
        %v2085 = vpack.c.b16 %v2027, %v2026
        %v2086 = vpack.c.b16 %v2029, %v2028
        %v2087 = vpack.c.b16 %v2031, %v2030
        %v2088 = vpack.c.b16 %v2033, %v2032
        %v2089 = vpack.c.b16 %v2035, %v2034
        %v2090 = vpack.c.b16 %v2037, %v2036
        %v2091 = vpack.c.b16 %v2039, %v2038
        %v2092 = vpack.c.b16 %v2041, %v2040
        %v2093 = vpack.c.b16 %v2043, %v2042
        %v2094 = vpack.c.b16 %v2045, %v2044
        %v2095 = vpack.c.b16 %v2047, %v2046
        %2144 = vmatpush.bf16.msra.mxu0 %v2055
        %2145 = vmatpush.bf16.msra.mxu0 %v2054
        %2146 = vmatpush.bf16.msra.mxu0 %v2053
        %2147 = vmatpush.bf16.msra.mxu0 %v2052
        %2148 = vmatpush.bf16.msra.mxu0 %v2051
        %2149 = vmatpush.bf16.msra.mxu0 %v2050
        %2150 = vmatpush.bf16.msra.mxu0 %v2049
        %2151 = vmatpush.bf16.msra.mxu0 %v2048
        %2152 = vmatmul.bf16.gmra.mxu0 %v1760
        %v2153 = vpop.f32.mrf.mxu0
        %v2154 = vadd.f32 %v1614, %v2153
        %v2155 = vpop.f32.mrf.mxu0
        %v2156 = vadd.f32 %v1614, %v2155
        %2157 = vmatmul.bf16.gmra.mxu0 %v1766
        %v2158 = vpop.f32.mrf.mxu0
        %v2159 = vadd.f32 %v1614, %v2158
        %v2160 = vpop.f32.mrf.mxu0
        %v2161 = vadd.f32 %v1614, %v2160
        %2162 = vmatmul.bf16.gmra.mxu0 %v1772
        %v2163 = vpop.f32.mrf.mxu0
        %v2164 = vadd.f32 %v1614, %v2163
        %v2165 = vpop.f32.mrf.mxu0
        %v2166 = vadd.f32 %v1614, %v2165
        %2167 = vmatmul.bf16.gmra.mxu0 %v1778
        %v2168 = vpop.f32.mrf.mxu0
        %v2169 = vadd.f32 %v1614, %v2168
        %v2170 = vpop.f32.mrf.mxu0
        %v2171 = vadd.f32 %v1614, %v2170
        %2172 = vmatmul.bf16.gmra.mxu0 %v1784
        %v2173 = vpop.f32.mrf.mxu0
        %v2174 = vadd.f32 %v1614, %v2173
        %v2175 = vpop.f32.mrf.mxu0
        %v2176 = vadd.f32 %v1614, %v2175
        %2177 = vmatmul.bf16.gmra.mxu0 %v1790
        %v2178 = vpop.f32.mrf.mxu0
        %v2179 = vadd.f32 %v1614, %v2178
        %v2180 = vpop.f32.mrf.mxu0
        %v2181 = vadd.f32 %v1614, %v2180
        %2182 = vmatmul.bf16.gmra.mxu0 %v1796
        %v2183 = vpop.f32.mrf.mxu0
        %v2184 = vadd.f32 %v1614, %v2183
        %v2185 = vpop.f32.mrf.mxu0
        %v2186 = vadd.f32 %v1614, %v2185
        %2187 = vmatmul.bf16.gmra.mxu0 %v1802
        %v2188 = vpop.f32.mrf.mxu0
        %v2189 = vadd.f32 %v1614, %v2188
        %v2190 = vpop.f32.mrf.mxu0
        %v2191 = vadd.f32 %v1614, %v2190
        %2192 = vdwg.mxu0
        %2193 = vmatpush.bf16.msra.mxu0 %v2063
        %2194 = vmatpush.bf16.msra.mxu0 %v2062
        %2195 = vmatpush.bf16.msra.mxu0 %v2061
        %2196 = vmatpush.bf16.msra.mxu0 %v2060
        %2197 = vmatpush.bf16.msra.mxu0 %v2059
        %2198 = vmatpush.bf16.msra.mxu0 %v2058
        %2199 = vmatpush.bf16.msra.mxu0 %v2057
        %2200 = vmatpush.bf16.msra.mxu0 %v2056
        %2201 = vmatmul.bf16.gmra.mxu0 %v1761
        %v2202 = vpop.f32.mrf.mxu0
        %v2203 = vadd.f32 %v2154, %v2202
        %v2204 = vpop.f32.mrf.mxu0
        %v2205 = vadd.f32 %v2156, %v2204
        %2206 = vmatmul.bf16.gmra.mxu0 %v1767
        %v2207 = vpop.f32.mrf.mxu0
        %v2208 = vadd.f32 %v2159, %v2207
        %v2209 = vpop.f32.mrf.mxu0
        %v2210 = vadd.f32 %v2161, %v2209
        %2211 = vmatmul.bf16.gmra.mxu0 %v1773
        %v2212 = vpop.f32.mrf.mxu0
        %v2213 = vadd.f32 %v2164, %v2212
        %v2214 = vpop.f32.mrf.mxu0
        %v2215 = vadd.f32 %v2166, %v2214
        %2216 = vmatmul.bf16.gmra.mxu0 %v1779
        %v2217 = vpop.f32.mrf.mxu0
        %v2218 = vadd.f32 %v2169, %v2217
        %v2219 = vpop.f32.mrf.mxu0
        %v2220 = vadd.f32 %v2171, %v2219
        %2221 = vmatmul.bf16.gmra.mxu0 %v1785
        %v2222 = vpop.f32.mrf.mxu0
        %v2223 = vadd.f32 %v2174, %v2222
        %v2224 = vpop.f32.mrf.mxu0
        %v2225 = vadd.f32 %v2176, %v2224
        %2226 = vmatmul.bf16.gmra.mxu0 %v1791
        %v2227 = vpop.f32.mrf.mxu0
        %v2228 = vadd.f32 %v2179, %v2227
        %v2229 = vpop.f32.mrf.mxu0
        %v2230 = vadd.f32 %v2181, %v2229
        %2231 = vmatmul.bf16.gmra.mxu0 %v1797
        %v2232 = vpop.f32.mrf.mxu0
        %v2233 = vadd.f32 %v2184, %v2232
        %v2234 = vpop.f32.mrf.mxu0
        %v2235 = vadd.f32 %v2186, %v2234
        %2236 = vmatmul.bf16.gmra.mxu0 %v1803
        %v2237 = vpop.f32.mrf.mxu0
        %v2238 = vadd.f32 %v2189, %v2237
        %v2239 = vpop.f32.mrf.mxu0
        %v2240 = vadd.f32 %v2191, %v2239
        %2241 = vdwg.mxu0
        %2242 = vmatpush.bf16.msra.mxu0 %v2071
        %2243 = vmatpush.bf16.msra.mxu0 %v2070
        %2244 = vmatpush.bf16.msra.mxu0 %v2069
        %2245 = vmatpush.bf16.msra.mxu0 %v2068
        %2246 = vmatpush.bf16.msra.mxu0 %v2067
        %2247 = vmatpush.bf16.msra.mxu0 %v2066
        %2248 = vmatpush.bf16.msra.mxu0 %v2065
        %2249 = vmatpush.bf16.msra.mxu0 %v2064
        %2250 = vmatmul.bf16.gmra.mxu0 %v1762
        %v2251 = vpop.f32.mrf.mxu0
        %v2252 = vadd.f32 %v2203, %v2251
        %v2253 = vpop.f32.mrf.mxu0
        %v2254 = vadd.f32 %v2205, %v2253
        %2255 = vmatmul.bf16.gmra.mxu0 %v1768
        %v2256 = vpop.f32.mrf.mxu0
        %v2257 = vadd.f32 %v2208, %v2256
        %v2258 = vpop.f32.mrf.mxu0
        %v2259 = vadd.f32 %v2210, %v2258
        %2260 = vmatmul.bf16.gmra.mxu0 %v1774
        %v2261 = vpop.f32.mrf.mxu0
        %v2262 = vadd.f32 %v2213, %v2261
        %v2263 = vpop.f32.mrf.mxu0
        %v2264 = vadd.f32 %v2215, %v2263
        %2265 = vmatmul.bf16.gmra.mxu0 %v1780
        %v2266 = vpop.f32.mrf.mxu0
        %v2267 = vadd.f32 %v2218, %v2266
        %v2268 = vpop.f32.mrf.mxu0
        %v2269 = vadd.f32 %v2220, %v2268
        %2270 = vmatmul.bf16.gmra.mxu0 %v1786
        %v2271 = vpop.f32.mrf.mxu0
        %v2272 = vadd.f32 %v2223, %v2271
        %v2273 = vpop.f32.mrf.mxu0
        %v2274 = vadd.f32 %v2225, %v2273
        %2275 = vmatmul.bf16.gmra.mxu0 %v1792
        %v2276 = vpop.f32.mrf.mxu0
        %v2277 = vadd.f32 %v2228, %v2276
        %v2278 = vpop.f32.mrf.mxu0
        %v2279 = vadd.f32 %v2230, %v2278
        %2280 = vmatmul.bf16.gmra.mxu0 %v1798
        %v2281 = vpop.f32.mrf.mxu0
        %v2282 = vadd.f32 %v2233, %v2281
        %v2283 = vpop.f32.mrf.mxu0
        %v2284 = vadd.f32 %v2235, %v2283
        %2285 = vmatmul.bf16.gmra.mxu0 %v1804
        %v2286 = vpop.f32.mrf.mxu0
        %v2287 = vadd.f32 %v2238, %v2286
        %v2288 = vpop.f32.mrf.mxu0
        %v2289 = vadd.f32 %v2240, %v2288
        %2290 = vdwg.mxu0
        %2291 = vmatpush.bf16.msra.mxu0 %v2079
        %2292 = vmatpush.bf16.msra.mxu0 %v2078
        %2293 = vmatpush.bf16.msra.mxu0 %v2077
        %2294 = vmatpush.bf16.msra.mxu0 %v2076
        %2295 = vmatpush.bf16.msra.mxu0 %v2075
        %2296 = vmatpush.bf16.msra.mxu0 %v2074
        %2297 = vmatpush.bf16.msra.mxu0 %v2073
        %2298 = vmatpush.bf16.msra.mxu0 %v2072
        %2299 = vmatmul.bf16.gmra.mxu0 %v1763
        %v2300 = vpop.f32.mrf.mxu0
        %v2301 = vadd.f32 %v2252, %v2300
        %v2302 = vpop.f32.mrf.mxu0
        %v2303 = vadd.f32 %v2254, %v2302
        %2304 = vmatmul.bf16.gmra.mxu0 %v1769
        %v2305 = vpop.f32.mrf.mxu0
        %v2306 = vadd.f32 %v2257, %v2305
        %v2307 = vpop.f32.mrf.mxu0
        %v2308 = vadd.f32 %v2259, %v2307
        %2309 = vmatmul.bf16.gmra.mxu0 %v1775
        %v2310 = vpop.f32.mrf.mxu0
        %v2311 = vadd.f32 %v2262, %v2310
        %v2312 = vpop.f32.mrf.mxu0
        %v2313 = vadd.f32 %v2264, %v2312
        %2314 = vmatmul.bf16.gmra.mxu0 %v1781
        %v2315 = vpop.f32.mrf.mxu0
        %v2316 = vadd.f32 %v2267, %v2315
        %v2317 = vpop.f32.mrf.mxu0
        %v2318 = vadd.f32 %v2269, %v2317
        %2319 = vmatmul.bf16.gmra.mxu0 %v1787
        %v2320 = vpop.f32.mrf.mxu0
        %v2321 = vadd.f32 %v2272, %v2320
        %v2322 = vpop.f32.mrf.mxu0
        %v2323 = vadd.f32 %v2274, %v2322
        %2324 = vmatmul.bf16.gmra.mxu0 %v1793
        %v2325 = vpop.f32.mrf.mxu0
        %v2326 = vadd.f32 %v2277, %v2325
        %v2327 = vpop.f32.mrf.mxu0
        %v2328 = vadd.f32 %v2279, %v2327
        %2329 = vmatmul.bf16.gmra.mxu0 %v1799
        %v2330 = vpop.f32.mrf.mxu0
        %v2331 = vadd.f32 %v2282, %v2330
        %v2332 = vpop.f32.mrf.mxu0
        %v2333 = vadd.f32 %v2284, %v2332
        %2334 = vmatmul.bf16.gmra.mxu0 %v1805
        %v2335 = vpop.f32.mrf.mxu0
        %v2336 = vadd.f32 %v2287, %v2335
        %v2337 = vpop.f32.mrf.mxu0
        %v2338 = vadd.f32 %v2289, %v2337
        %2339 = vdwg.mxu0
        %2340 = vmatpush.bf16.msra.mxu0 %v2087
        %2341 = vmatpush.bf16.msra.mxu0 %v2086
        %2342 = vmatpush.bf16.msra.mxu0 %v2085
        %2343 = vmatpush.bf16.msra.mxu0 %v2084
        %2344 = vmatpush.bf16.msra.mxu0 %v2083
        %2345 = vmatpush.bf16.msra.mxu0 %v2082
        %2346 = vmatpush.bf16.msra.mxu0 %v2081
        %2347 = vmatpush.bf16.msra.mxu0 %v2080
        %2348 = vmatmul.bf16.gmra.mxu0 %v1764
        %v2349 = vpop.f32.mrf.mxu0
        %v2350 = vadd.f32 %v2301, %v2349
        %v2351 = vpop.f32.mrf.mxu0
        %v2352 = vadd.f32 %v2303, %v2351
        %2353 = vmatmul.bf16.gmra.mxu0 %v1770
        %v2354 = vpop.f32.mrf.mxu0
        %v2355 = vadd.f32 %v2306, %v2354
        %v2356 = vpop.f32.mrf.mxu0
        %v2357 = vadd.f32 %v2308, %v2356
        %2358 = vmatmul.bf16.gmra.mxu0 %v1776
        %v2359 = vpop.f32.mrf.mxu0
        %v2360 = vadd.f32 %v2311, %v2359
        %v2361 = vpop.f32.mrf.mxu0
        %v2362 = vadd.f32 %v2313, %v2361
        %2363 = vmatmul.bf16.gmra.mxu0 %v1782
        %v2364 = vpop.f32.mrf.mxu0
        %v2365 = vadd.f32 %v2316, %v2364
        %v2366 = vpop.f32.mrf.mxu0
        %v2367 = vadd.f32 %v2318, %v2366
        %2368 = vmatmul.bf16.gmra.mxu0 %v1788
        %v2369 = vpop.f32.mrf.mxu0
        %v2370 = vadd.f32 %v2321, %v2369
        %v2371 = vpop.f32.mrf.mxu0
        %v2372 = vadd.f32 %v2323, %v2371
        %2373 = vmatmul.bf16.gmra.mxu0 %v1794
        %v2374 = vpop.f32.mrf.mxu0
        %v2375 = vadd.f32 %v2326, %v2374
        %v2376 = vpop.f32.mrf.mxu0
        %v2377 = vadd.f32 %v2328, %v2376
        %2378 = vmatmul.bf16.gmra.mxu0 %v1800
        %v2379 = vpop.f32.mrf.mxu0
        %v2380 = vadd.f32 %v2331, %v2379
        %v2381 = vpop.f32.mrf.mxu0
        %v2382 = vadd.f32 %v2333, %v2381
        %2383 = vmatmul.bf16.gmra.mxu0 %v1806
        %v2384 = vpop.f32.mrf.mxu0
        %v2385 = vadd.f32 %v2336, %v2384
        %v2386 = vpop.f32.mrf.mxu0
        %v2387 = vadd.f32 %v2338, %v2386
        %2388 = vdwg.mxu0
        %2389 = vmatpush.bf16.msra.mxu0 %v2095
        %2390 = vmatpush.bf16.msra.mxu0 %v2094
        %2391 = vmatpush.bf16.msra.mxu0 %v2093
        %2392 = vmatpush.bf16.msra.mxu0 %v2092
        %2393 = vmatpush.bf16.msra.mxu0 %v2091
        %2394 = vmatpush.bf16.msra.mxu0 %v2090
        %2395 = vmatpush.bf16.msra.mxu0 %v2089
        %2396 = vmatpush.bf16.msra.mxu0 %v2088
        %2397 = vmatmul.bf16.gmra.mxu0 %v1765
        %v2398 = vpop.f32.mrf.mxu0
        %v2399 = vadd.f32 %v2350, %v2398
        %v2400 = vpop.f32.mrf.mxu0
        %v2401 = vadd.f32 %v2352, %v2400
        %2402 = vmatmul.bf16.gmra.mxu0 %v1771
        %v2403 = vpop.f32.mrf.mxu0
        %v2404 = vadd.f32 %v2355, %v2403
        %v2405 = vpop.f32.mrf.mxu0
        %v2406 = vadd.f32 %v2357, %v2405
        %2407 = vmatmul.bf16.gmra.mxu0 %v1777
        %v2408 = vpop.f32.mrf.mxu0
        %v2409 = vadd.f32 %v2360, %v2408
        %v2410 = vpop.f32.mrf.mxu0
        %v2411 = vadd.f32 %v2362, %v2410
        %2412 = vmatmul.bf16.gmra.mxu0 %v1783
        %v2413 = vpop.f32.mrf.mxu0
        %v2414 = vadd.f32 %v2365, %v2413
        %v2415 = vpop.f32.mrf.mxu0
        %v2416 = vadd.f32 %v2367, %v2415
        %2417 = vmatmul.bf16.gmra.mxu0 %v1789
        %v2418 = vpop.f32.mrf.mxu0
        %v2419 = vadd.f32 %v2370, %v2418
        %v2420 = vpop.f32.mrf.mxu0
        %v2421 = vadd.f32 %v2372, %v2420
        %2422 = vmatmul.bf16.gmra.mxu0 %v1795
        %v2423 = vpop.f32.mrf.mxu0
        %v2424 = vadd.f32 %v2375, %v2423
        %v2425 = vpop.f32.mrf.mxu0
        %v2426 = vadd.f32 %v2377, %v2425
        %2427 = vmatmul.bf16.gmra.mxu0 %v1801
        %v2428 = vpop.f32.mrf.mxu0
        %v2429 = vadd.f32 %v2380, %v2428
        %v2430 = vpop.f32.mrf.mxu0
        %v2431 = vadd.f32 %v2382, %v2430
        %2432 = vmatmul.bf16.gmra.mxu0 %v1807
        %v2433 = vpop.f32.mrf.mxu0
        %v2434 = vadd.f32 %v2385, %v2433
        %v2435 = vpop.f32.mrf.mxu0
        %v2436 = vadd.f32 %v2387, %v2435
        %2437 = vdwg.mxu0
        %v2438 = vld [vmem:[%s495] sm:$0xff]
        %v2439 = vld [vmem:[%s495 + $0x8] sm:$0xff]
        %v2440 = vld [vmem:[%s495 + $0x10] sm:$0xff]
        %v2441 = vld [vmem:[%s495 + $0x18] sm:$0xff]
        %v2442 = vld [vmem:[%s495 + $0x20] sm:$0xff]
        %v2443 = vld [vmem:[%s495 + $0x28] sm:$0xff]
        %v2444 = vld [vmem:[%s495 + $0x30] sm:$0xff]
        %v2445 = vld [vmem:[%s495 + $0x38] sm:$0xff]
        %v2446 = vld [vmem:[%s495 + $0x40] sm:$0xff]
        %v2447 = vld [vmem:[%s495 + $0x48] sm:$0xff]
        %v2448 = vld [vmem:[%s495 + $0x50] sm:$0xff]
        %v2449 = vld [vmem:[%s495 + $0x58] sm:$0xff]
        %v2450 = vld [vmem:[%s495 + $0x60] sm:$0xff]
        %v2451 = vld [vmem:[%s495 + $0x68] sm:$0xff]
        %v2452 = vld [vmem:[%s495 + $0x70] sm:$0xff]
        %v2453 = vld [vmem:[%s495 + $0x78] sm:$0xff]
        %vm2454 = vcmp.gt.f32.partialorder %v2438, 0.5
        %vm2455 = vcmp.gt.f32.partialorder %v2439, 0.5
        %vm2456 = vcmp.gt.f32.partialorder %v2440, 0.5
        %vm2457 = vcmp.gt.f32.partialorder %v2441, 0.5
        %vm2458 = vcmp.gt.f32.partialorder %v2442, 0.5
        %vm2459 = vcmp.gt.f32.partialorder %v2443, 0.5
        %vm2460 = vcmp.gt.f32.partialorder %v2444, 0.5
        %vm2461 = vcmp.gt.f32.partialorder %v2445, 0.5
        %vm2462 = vcmp.gt.f32.partialorder %v2446, 0.5
        %vm2463 = vcmp.gt.f32.partialorder %v2447, 0.5
        %vm2464 = vcmp.gt.f32.partialorder %v2448, 0.5
        %vm2465 = vcmp.gt.f32.partialorder %v2449, 0.5
        %vm2466 = vcmp.gt.f32.partialorder %v2450, 0.5
        %vm2467 = vcmp.gt.f32.partialorder %v2451, 0.5
        %vm2468 = vcmp.gt.f32.partialorder %v2452, 0.5
        %vm2469 = vcmp.gt.f32.partialorder %v2453, 0.5
        %v2470 = vsel %vm2454, 1, 0
        %v2471 = vsel %vm2455, 1, 0
        %v2472 = vsel %vm2456, 1, 0
        %v2473 = vsel %vm2457, 1, 0
        %v2474 = vsel %vm2458, 1, 0
        %v2475 = vsel %vm2459, 1, 0
        %v2476 = vsel %vm2460, 1, 0
        %v2477 = vsel %vm2461, 1, 0
        %v2478 = vsel %vm2462, 1, 0
        %v2479 = vsel %vm2463, 1, 0
        %v2480 = vsel %vm2464, 1, 0
        %v2481 = vsel %vm2465, 1, 0
        %v2482 = vsel %vm2466, 1, 0
        %v2483 = vsel %vm2467, 1, 0
        %v2484 = vsel %vm2468, 1, 0
        %v2485 = vsel %vm2469, 1, 0
        %2486 = vset.pattern.permute.xlu0 0
        %2487 = vperm.xlu0 %2486, %v2470
        %v2488 = vpop.permute.xlu0 %2487
        %2489 = vset.pattern.permute.xlu0 0
        %2490 = vperm.xlu0 %2489, %v2471
        %v2491 = vpop.permute.xlu0 %2490
        %2492 = vset.pattern.permute.xlu0 0
        %2493 = vperm.xlu0 %2492, %v2472
        %v2494 = vpop.permute.xlu0 %2493
        %2495 = vset.pattern.permute.xlu0 0
        %2496 = vperm.xlu0 %2495, %v2473
        %v2497 = vpop.permute.xlu0 %2496
        %2498 = vset.pattern.permute.xlu0 0
        %2499 = vperm.xlu0 %2498, %v2474
        %v2500 = vpop.permute.xlu0 %2499
        %2501 = vset.pattern.permute.xlu0 0
        %2502 = vperm.xlu0 %2501, %v2475
        %v2503 = vpop.permute.xlu0 %2502
        %2504 = vset.pattern.permute.xlu0 0
        %2505 = vperm.xlu0 %2504, %v2476
        %v2506 = vpop.permute.xlu0 %2505
        %2507 = vset.pattern.permute.xlu0 0
        %2508 = vperm.xlu0 %2507, %v2477
        %v2509 = vpop.permute.xlu0 %2508
        %2510 = vset.pattern.permute.xlu0 0
        %2511 = vperm.xlu0 %2510, %v2478
        %v2512 = vpop.permute.xlu0 %2511
        %2513 = vset.pattern.permute.xlu0 0
        %2514 = vperm.xlu0 %2513, %v2479
        %v2515 = vpop.permute.xlu0 %2514
        %2516 = vset.pattern.permute.xlu0 0
        %2517 = vperm.xlu0 %2516, %v2480
        %v2518 = vpop.permute.xlu0 %2517
        %2519 = vset.pattern.permute.xlu0 0
        %2520 = vperm.xlu0 %2519, %v2481
        %v2521 = vpop.permute.xlu0 %2520
        %2522 = vset.pattern.permute.xlu0 0
        %2523 = vperm.xlu0 %2522, %v2482
        %v2524 = vpop.permute.xlu0 %2523
        %2525 = vset.pattern.permute.xlu0 0
        %2526 = vperm.xlu0 %2525, %v2483
        %v2527 = vpop.permute.xlu0 %2526
        %2528 = vset.pattern.permute.xlu0 0
        %2529 = vperm.xlu0 %2528, %v2484
        %v2530 = vpop.permute.xlu0 %2529
        %2531 = vset.pattern.permute.xlu0 0
        %2532 = vperm.xlu0 %2531, %v2485
        %v2533 = vpop.permute.xlu0 %2532
        %vm2534 = vcmp.eq.s32.totalorder %v2488, 1
        %vm2535 = vcmp.eq.s32.totalorder %v2491, 1
        %vm2536 = vcmp.eq.s32.totalorder %v2494, 1
        %vm2537 = vcmp.eq.s32.totalorder %v2497, 1
        %vm2538 = vcmp.eq.s32.totalorder %v2500, 1
        %vm2539 = vcmp.eq.s32.totalorder %v2503, 1
        %vm2540 = vcmp.eq.s32.totalorder %v2506, 1
        %vm2541 = vcmp.eq.s32.totalorder %v2509, 1
        %vm2542 = vcmp.eq.s32.totalorder %v2512, 1
        %vm2543 = vcmp.eq.s32.totalorder %v2515, 1
        %vm2544 = vcmp.eq.s32.totalorder %v2518, 1
        %vm2545 = vcmp.eq.s32.totalorder %v2521, 1
        %vm2546 = vcmp.eq.s32.totalorder %v2524, 1
        %vm2547 = vcmp.eq.s32.totalorder %v2527, 1
        %vm2548 = vcmp.eq.s32.totalorder %v2530, 1
        %vm2549 = vcmp.eq.s32.totalorder %v2533, 1
        %v2550 = vsel %vm2534, %v1429, %v2399
        %v2551 = vsel %vm2535, %v1431, %v2401
        %v2552 = vsel %vm2536, %v1434, %v2404
        %v2553 = vsel %vm2537, %v1436, %v2406
        %v2554 = vsel %vm2538, %v1439, %v2409
        %v2555 = vsel %vm2539, %v1441, %v2411
        %v2556 = vsel %vm2540, %v1444, %v2414
        %v2557 = vsel %vm2541, %v1446, %v2416
        %v2558 = vsel %vm2542, %v1449, %v2419
        %v2559 = vsel %vm2543, %v1451, %v2421
        %v2560 = vsel %vm2544, %v1454, %v2424
        %v2561 = vsel %vm2545, %v1456, %v2426
        %v2562 = vsel %vm2546, %v1459, %v2429
        %v2563 = vsel %vm2547, %v1461, %v2431
        %v2564 = vsel %vm2548, %v1464, %v2434
        %v2565 = vsel %vm2549, %v1466, %v2436
        %v2566 = vsel %vm2534, %v2399, %v1429
        %v2567 = vsel %vm2535, %v2401, %v1431
        %v2568 = vsel %vm2536, %v2404, %v1434
        %v2569 = vsel %vm2537, %v2406, %v1436
        %v2570 = vsel %vm2538, %v2409, %v1439
        %v2571 = vsel %vm2539, %v2411, %v1441
        %v2572 = vsel %vm2540, %v2414, %v1444
        %v2573 = vsel %vm2541, %v2416, %v1446
        %v2574 = vsel %vm2542, %v2419, %v1449
        %v2575 = vsel %vm2543, %v2421, %v1451
        %v2576 = vsel %vm2544, %v2424, %v1454
        %v2577 = vsel %vm2545, %v2426, %v1456
        %v2578 = vsel %vm2546, %v2429, %v1459
        %v2579 = vsel %vm2547, %v2431, %v1461
        %v2580 = vsel %vm2548, %v2434, %v1464
        %v2581 = vsel %vm2549, %v2436, %v1466
        %v2582 = vmax.f32 %v2550, 0.0
        %v2583 = vmax.f32 %v2551, 0.0
        %v2584 = vmax.f32 %v2552, 0.0
        %v2585 = vmax.f32 %v2553, 0.0
        %v2586 = vmax.f32 %v2554, 0.0
        %v2587 = vmax.f32 %v2555, 0.0
        %v2588 = vmax.f32 %v2556, 0.0
        %v2589 = vmax.f32 %v2557, 0.0
        %v2590 = vmax.f32 %v2558, 0.0
        %v2591 = vmax.f32 %v2559, 0.0
        %v2592 = vmax.f32 %v2560, 0.0
        %v2593 = vmax.f32 %v2561, 0.0
        %v2594 = vmax.f32 %v2562, 0.0
        %v2595 = vmax.f32 %v2563, 0.0
        %v2596 = vmax.f32 %v2564, 0.0
        %v2597 = vmax.f32 %v2565, 0.0
        %v2598 = vmin.f32 %v2582, 1.0
        %v2599 = vmin.f32 %v2583, 1.0
        %v2600 = vmin.f32 %v2584, 1.0
        %v2601 = vmin.f32 %v2585, 1.0
        %v2602 = vmin.f32 %v2586, 1.0
        %v2603 = vmin.f32 %v2587, 1.0
        %v2604 = vmin.f32 %v2588, 1.0
        %v2605 = vmin.f32 %v2589, 1.0
        %v2606 = vmin.f32 %v2590, 1.0
        %v2607 = vmin.f32 %v2591, 1.0
        %v2608 = vmin.f32 %v2592, 1.0
        %v2609 = vmin.f32 %v2593, 1.0
        %v2610 = vmin.f32 %v2594, 1.0
        %v2611 = vmin.f32 %v2595, 1.0
        %v2612 = vmin.f32 %v2596, 1.0
        %v2613 = vmin.f32 %v2597, 1.0
        %v2614 = vmul.f32 %v2598, %v2598
        %v2615 = vmul.f32 %v2599, %v2599
        %v2616 = vmul.f32 %v2600, %v2600
        %v2617 = vmul.f32 %v2601, %v2601
        %v2618 = vmul.f32 %v2602, %v2602
        %v2619 = vmul.f32 %v2603, %v2603
        %v2620 = vmul.f32 %v2604, %v2604
        %v2621 = vmul.f32 %v2605, %v2605
        %v2622 = vmul.f32 %v2606, %v2606
        %v2623 = vmul.f32 %v2607, %v2607
        %v2624 = vmul.f32 %v2608, %v2608
        %v2625 = vmul.f32 %v2609, %v2609
        %v2626 = vmul.f32 %v2610, %v2610
        %v2627 = vmul.f32 %v2611, %v2611
        %v2628 = vmul.f32 %v2612, %v2612
        %v2629 = vmul.f32 %v2613, %v2613
        %v2630 = vmax.f32 %v2566, 0.0
        %v2631 = vmax.f32 %v2567, 0.0
        %v2632 = vmax.f32 %v2568, 0.0
        %v2633 = vmax.f32 %v2569, 0.0
        %v2634 = vmax.f32 %v2570, 0.0
        %v2635 = vmax.f32 %v2571, 0.0
        %v2636 = vmax.f32 %v2572, 0.0
        %v2637 = vmax.f32 %v2573, 0.0
        %v2638 = vmax.f32 %v2574, 0.0
        %v2639 = vmax.f32 %v2575, 0.0
        %v2640 = vmax.f32 %v2576, 0.0
        %v2641 = vmax.f32 %v2577, 0.0
        %v2642 = vmax.f32 %v2578, 0.0
        %v2643 = vmax.f32 %v2579, 0.0
        %v2644 = vmax.f32 %v2580, 0.0
        %v2645 = vmax.f32 %v2581, 0.0
        %v2646 = vmin.f32 %v2630, 1.0
        %v2647 = vmin.f32 %v2631, 1.0
        %v2648 = vmin.f32 %v2632, 1.0
        %v2649 = vmin.f32 %v2633, 1.0
        %v2650 = vmin.f32 %v2634, 1.0
        %v2651 = vmin.f32 %v2635, 1.0
        %v2652 = vmin.f32 %v2636, 1.0
        %v2653 = vmin.f32 %v2637, 1.0
        %v2654 = vmin.f32 %v2638, 1.0
        %v2655 = vmin.f32 %v2639, 1.0
        %v2656 = vmin.f32 %v2640, 1.0
        %v2657 = vmin.f32 %v2641, 1.0
        %v2658 = vmin.f32 %v2642, 1.0
        %v2659 = vmin.f32 %v2643, 1.0
        %v2660 = vmin.f32 %v2644, 1.0
        %v2661 = vmin.f32 %v2645, 1.0
        %v2662 = vmul.f32 %v2646, %v2646
        %v2663 = vmul.f32 %v2647, %v2647
        %v2664 = vmul.f32 %v2648, %v2648
        %v2665 = vmul.f32 %v2649, %v2649
        %v2666 = vmul.f32 %v2650, %v2650
        %v2667 = vmul.f32 %v2651, %v2651
        %v2668 = vmul.f32 %v2652, %v2652
        %v2669 = vmul.f32 %v2653, %v2653
        %v2670 = vmul.f32 %v2654, %v2654
        %v2671 = vmul.f32 %v2655, %v2655
        %v2672 = vmul.f32 %v2656, %v2656
        %v2673 = vmul.f32 %v2657, %v2657
        %v2674 = vmul.f32 %v2658, %v2658
        %v2675 = vmul.f32 %v2659, %v2659
        %v2676 = vmul.f32 %v2660, %v2660
        %v2677 = vmul.f32 %v2661, %v2661
        %v2678 = vld [vmem:[#allocation8] sm:$0xff]
        %v2679 = vld [vmem:[#allocation8 + $0x8] sm:$0xff]
        %v2680 = vld [vmem:[#allocation8 + $0x10] sm:$0xff]
        %v2681 = vld [vmem:[#allocation8 + $0x18] sm:$0xff]
        %v2682 = vld [vmem:[#allocation8 + $0x20] sm:$0xff]
        %v2683 = vld [vmem:[#allocation8 + $0x28] sm:$0xff]
        %v2684 = vld [vmem:[#allocation8 + $0x30] sm:$0xff]
        %v2685 = vld [vmem:[#allocation8 + $0x38] sm:$0xff]
        %v2686 = vld [vmem:[#allocation8 + $0x40] sm:$0xff]
        %v2687 = vld [vmem:[#allocation8 + $0x48] sm:$0xff]
        %v2688 = vld [vmem:[#allocation8 + $0x50] sm:$0xff]
        %v2689 = vld [vmem:[#allocation8 + $0x58] sm:$0xff]
        %v2690 = vld [vmem:[#allocation8 + $0x60] sm:$0xff]
        %v2691 = vld [vmem:[#allocation8 + $0x68] sm:$0xff]
        %v2692 = vld [vmem:[#allocation8 + $0x70] sm:$0xff]
        %v2693 = vld [vmem:[#allocation8 + $0x78] sm:$0xff]
        %v2694 = vld [vmem:[#allocation10] sm:$0xff]
        %v2695 = vld [vmem:[#allocation10 + $0x8] sm:$0xff]
        %v2696 = vld [vmem:[#allocation10 + $0x10] sm:$0xff]
        %v2697 = vld [vmem:[#allocation10 + $0x18] sm:$0xff]
        %v2698 = vld [vmem:[#allocation10 + $0x20] sm:$0xff]
        %v2699 = vld [vmem:[#allocation10 + $0x28] sm:$0xff]
        %v2700 = vld [vmem:[#allocation10 + $0x30] sm:$0xff]
        %v2701 = vld [vmem:[#allocation10 + $0x38] sm:$0xff]
        %v2702 = vld [vmem:[#allocation10 + $0x40] sm:$0xff]
        %v2703 = vld [vmem:[#allocation10 + $0x48] sm:$0xff]
        %v2704 = vld [vmem:[#allocation10 + $0x50] sm:$0xff]
        %v2705 = vld [vmem:[#allocation10 + $0x58] sm:$0xff]
        %v2706 = vld [vmem:[#allocation10 + $0x60] sm:$0xff]
        %v2707 = vld [vmem:[#allocation10 + $0x68] sm:$0xff]
        %v2708 = vld [vmem:[#allocation10 + $0x70] sm:$0xff]
        %v2709 = vld [vmem:[#allocation10 + $0x78] sm:$0xff]
        %2710 = vmatpush.msra.mxu0 %v2709
        %2711 = vmatpush.msra.mxu0 %v2708
        %2712 = vmatpush.msra.mxu0 %v2707
        %2713 = vmatpush.msra.mxu0 %v2706
        %2714 = vmatpush.msra.mxu0 %v2705
        %2715 = vmatpush.msra.mxu0 %v2704
        %2716 = vmatpush.msra.mxu0 %v2703
        %2717 = vmatpush.msra.mxu0 %v2702
        %2718 = vmatpush.msra.mxu0 %v2701
        %2719 = vmatpush.msra.mxu0 %v2700
        %2720 = vmatpush.msra.mxu0 %v2699
        %2721 = vmatpush.msra.mxu0 %v2698
        %2722 = vmatpush.msra.mxu0 %v2697
        %2723 = vmatpush.msra.mxu0 %v2696
        %2724 = vmatpush.msra.mxu0 %v2695
        %2725 = vmatpush.msra.mxu0 %v2694
        %2726 = vmatmul.f32.gmra.mxu0 %v2662
        %v2727 = vpop.f32.mrf.mxu0
        %v2728 = vadd.f32 0.0, %v2727
        %2729 = vmatmul.f32.gmra.mxu0 %v2663
        %v2730 = vpop.f32.mrf.mxu0
        %v2731 = vadd.f32 0.0, %v2730
        %2732 = vmatmul.f32.gmra.mxu0 %v2664
        %v2733 = vpop.f32.mrf.mxu0
        %v2734 = vadd.f32 0.0, %v2733
        %2735 = vmatmul.f32.gmra.mxu0 %v2665
        %v2736 = vpop.f32.mrf.mxu0
        %v2737 = vadd.f32 0.0, %v2736
        %2738 = vmatmul.f32.gmra.mxu0 %v2666
        %v2739 = vpop.f32.mrf.mxu0
        %v2740 = vadd.f32 0.0, %v2739
        %2741 = vmatmul.f32.gmra.mxu0 %v2667
        %v2742 = vpop.f32.mrf.mxu0
        %v2743 = vadd.f32 0.0, %v2742
        %2744 = vmatmul.f32.gmra.mxu0 %v2668
        %v2745 = vpop.f32.mrf.mxu0
        %v2746 = vadd.f32 0.0, %v2745
        %2747 = vmatmul.f32.gmra.mxu0 %v2669
        %v2748 = vpop.f32.mrf.mxu0
        %v2749 = vadd.f32 0.0, %v2748
        %2750 = vmatmul.f32.gmra.mxu0 %v2670
        %v2751 = vpop.f32.mrf.mxu0
        %v2752 = vadd.f32 0.0, %v2751
        %2753 = vmatmul.f32.gmra.mxu0 %v2671
        %v2754 = vpop.f32.mrf.mxu0
        %v2755 = vadd.f32 0.0, %v2754
        %2756 = vmatmul.f32.gmra.mxu0 %v2672
        %v2757 = vpop.f32.mrf.mxu0
        %v2758 = vadd.f32 0.0, %v2757
        %2759 = vmatmul.f32.gmra.mxu0 %v2673
        %v2760 = vpop.f32.mrf.mxu0
        %v2761 = vadd.f32 0.0, %v2760
        %2762 = vmatmul.f32.gmra.mxu0 %v2674
        %v2763 = vpop.f32.mrf.mxu0
        %v2764 = vadd.f32 0.0, %v2763
        %2765 = vmatmul.f32.gmra.mxu0 %v2675
        %v2766 = vpop.f32.mrf.mxu0
        %v2767 = vadd.f32 0.0, %v2766
        %2768 = vmatmul.f32.gmra.mxu0 %v2676
        %v2769 = vpop.f32.mrf.mxu0
        %v2770 = vadd.f32 0.0, %v2769
        %2771 = vmatmul.f32.gmra.mxu0 %v2677
        %v2772 = vpop.f32.mrf.mxu0
        %v2773 = vadd.f32 0.0, %v2772
        %2774 = vdwg.mxu0
        %2775 = vmatpush.msra.mxu0 %v2693
        %2776 = vmatpush.msra.mxu0 %v2692
        %2777 = vmatpush.msra.mxu0 %v2691
        %2778 = vmatpush.msra.mxu0 %v2690
        %2779 = vmatpush.msra.mxu0 %v2689
        %2780 = vmatpush.msra.mxu0 %v2688
        %2781 = vmatpush.msra.mxu0 %v2687
        %2782 = vmatpush.msra.mxu0 %v2686
        %2783 = vmatpush.msra.mxu0 %v2685
        %2784 = vmatpush.msra.mxu0 %v2684
        %2785 = vmatpush.msra.mxu0 %v2683
        %2786 = vmatpush.msra.mxu0 %v2682
        %2787 = vmatpush.msra.mxu0 %v2681
        %2788 = vmatpush.msra.mxu0 %v2680
        %2789 = vmatpush.msra.mxu0 %v2679
        %2790 = vmatpush.msra.mxu0 %v2678
        %2791 = vmatmul.f32.gmra.mxu0 %v2614
        %v2792 = vpop.f32.mrf.mxu0
        %v2793 = vadd.f32 %v2728, %v2792
        %2794 = vmatmul.f32.gmra.mxu0 %v2615
        %v2795 = vpop.f32.mrf.mxu0
        %v2796 = vadd.f32 %v2731, %v2795
        %2797 = vmatmul.f32.gmra.mxu0 %v2616
        %v2798 = vpop.f32.mrf.mxu0
        %v2799 = vadd.f32 %v2734, %v2798
        %2800 = vmatmul.f32.gmra.mxu0 %v2617
        %v2801 = vpop.f32.mrf.mxu0
        %v2802 = vadd.f32 %v2737, %v2801
        %2803 = vmatmul.f32.gmra.mxu0 %v2618
        %v2804 = vpop.f32.mrf.mxu0
        %v2805 = vadd.f32 %v2740, %v2804
        %2806 = vmatmul.f32.gmra.mxu0 %v2619
        %v2807 = vpop.f32.mrf.mxu0
        %v2808 = vadd.f32 %v2743, %v2807
        %2809 = vmatmul.f32.gmra.mxu0 %v2620
        %v2810 = vpop.f32.mrf.mxu0
        %v2811 = vadd.f32 %v2746, %v2810
        %2812 = vmatmul.f32.gmra.mxu0 %v2621
        %v2813 = vpop.f32.mrf.mxu0
        %v2814 = vadd.f32 %v2749, %v2813
        %2815 = vmatmul.f32.gmra.mxu0 %v2622
        %v2816 = vpop.f32.mrf.mxu0
        %v2817 = vadd.f32 %v2752, %v2816
        %2818 = vmatmul.f32.gmra.mxu0 %v2623
        %v2819 = vpop.f32.mrf.mxu0
        %v2820 = vadd.f32 %v2755, %v2819
        %2821 = vmatmul.f32.gmra.mxu0 %v2624
        %v2822 = vpop.f32.mrf.mxu0
        %v2823 = vadd.f32 %v2758, %v2822
        %2824 = vmatmul.f32.gmra.mxu0 %v2625
        %v2825 = vpop.f32.mrf.mxu0
        %v2826 = vadd.f32 %v2761, %v2825
        %2827 = vmatmul.f32.gmra.mxu0 %v2626
        %v2828 = vpop.f32.mrf.mxu0
        %v2829 = vadd.f32 %v2764, %v2828
        %2830 = vmatmul.f32.gmra.mxu0 %v2627
        %v2831 = vpop.f32.mrf.mxu0
        %v2832 = vadd.f32 %v2767, %v2831
        %2833 = vmatmul.f32.gmra.mxu0 %v2628
        %v2834 = vpop.f32.mrf.mxu0
        %v2835 = vadd.f32 %v2770, %v2834
        %2836 = vmatmul.f32.gmra.mxu0 %v2629
        %v2837 = vpop.f32.mrf.mxu0
        %v2838 = vadd.f32 %v2773, %v2837
        %2839 = vdwg.mxu0
        %v2840 = vld [vmem:[%s9] sm:$0x1]
        %v2842 = vperm.slane %v2840, 0
        %v2844 = vadd.f32 %v2793, %v2842
        %v2845 = vadd.f32 %v2796, %v2842
        %v2846 = vadd.f32 %v2799, %v2842
        %v2847 = vadd.f32 %v2802, %v2842
        %v2848 = vadd.f32 %v2805, %v2842
        %v2849 = vadd.f32 %v2808, %v2842
        %v2850 = vadd.f32 %v2811, %v2842
        %v2851 = vadd.f32 %v2814, %v2842
        %v2852 = vadd.f32 %v2817, %v2842
        %v2853 = vadd.f32 %v2820, %v2842
        %v2854 = vadd.f32 %v2823, %v2842
        %v2855 = vadd.f32 %v2826, %v2842
        %v2856 = vadd.f32 %v2829, %v2842
        %v2857 = vadd.f32 %v2832, %v2842
        %v2858 = vadd.f32 %v2835, %v2842
        %v2859 = vadd.f32 %v2838, %v2842
        %2860 = vst [vmem:[%s488] sm:$0xff] %v2844
        %2861 = vst [vmem:[%s488 + $0x8] sm:$0xff] %v2845
        %2862 = vst [vmem:[%s488 + $0x10] sm:$0xff] %v2846
        %2863 = vst [vmem:[%s488 + $0x18] sm:$0xff] %v2847
        %2864 = vst [vmem:[%s488 + $0x20] sm:$0xff] %v2848
        %2865 = vst [vmem:[%s488 + $0x28] sm:$0xff] %v2849
        %2866 = vst [vmem:[%s488 + $0x30] sm:$0xff] %v2850
        %2867 = vst [vmem:[%s488 + $0x38] sm:$0xff] %v2851
        %2868 = vst [vmem:[%s488 + $0x40] sm:$0xff] %v2852
        %2869 = vst [vmem:[%s488 + $0x48] sm:$0xff] %v2853
        %2870 = vst [vmem:[%s488 + $0x50] sm:$0xff] %v2854
        %2871 = vst [vmem:[%s488 + $0x58] sm:$0xff] %v2855
        %2872 = vst [vmem:[%s488 + $0x60] sm:$0xff] %v2856
        %2873 = vst [vmem:[%s488 + $0x68] sm:$0xff] %v2857
        %2874 = vst [vmem:[%s488 + $0x70] sm:$0xff] %v2858
        %2875 = vst [vmem:[%s488 + $0x78] sm:$0xff] %v2859
        %s2876 = sand.u32 %s264, 1
        %s2877 = scalar_lea.sflag [#allocation4], %s2876
        %s2878 = sand.u32 %s264, 1
        %s2879 = smul.addr %s2878, 128
        %s2880 = scalar_lea.vmem [#allocation11], %s2879
        // Predicated region
        $region81: #{tpu_custom_call.1} parent=59 // pred_check
          %p2881 = pneg %p274
        $region82: #{tpu_custom_call.1} parent=59 // pred_check_branch
          %2883 = sbr.rel (%p2881) target = $region84
        $region83: #{tpu_custom_call.1} parent=59 // pred_region
          %s2884 = smul.u32 16, %s31
          %2886 = vsyncadd %s2877, 0
          %s2887 = smul.addr %s2884, 8
          %s2888 = scalar_lea.hbm %s10, %s2887
          %s2889 = sshll.u32 %s2880, 4
          %s2890 = int_to_ptr.vmem [resolvable:$true] %s2889
          %s2891 = sshll.u32 %s2888, 4
          %s2892 = int_to_ptr.hbm [resolvable:$true] %s2891
          %2897 = dma.vmem_to_hbm [thread:$0]  %s2890, 2048, %s2892, %s2877, 128, 128, 8
        $region84: #{tpu_custom_call.1} parent=59 // pred_fallthru
          _
      $region60: #{tpu_custom_call.1} parent=5 // pred_fallthru
        _
      %p2898 = scmp.le.s32.totalorder 2, %s26
      // Predicated region
      $region85: #{tpu_custom_call.1} parent=5 // pred_check
        %p2899 = pneg %p2898
      $region86: #{tpu_custom_call.1} parent=5 // pred_check_branch
        %2901 = sbr.rel (%p2899) target = $region88
      $region87: #{tpu_custom_call.1} parent=5 // pred_region
        %s2902 = ssub.s32 %s26, 2
        // Predicated region
        $region89: #{tpu_custom_call.1} parent=87 // pred_check
          %p2903 = pneg %p280
        $region90: #{tpu_custom_call.1} parent=87 // pred_check_branch
          %2905 = sbr.rel (%p2903) target = $region92
        $region91: #{tpu_custom_call.1} parent=87 // pred_region
          %s2906 = sand.u32 %s265, 1
          %s2907 = scalar_lea.sflag [#allocation4], %s2906
          %s2908 = sand.u32 %s265, 1
          %s2909 = smul.addr %s2908, 128
          %s2910 = scalar_lea.vmem [#allocation11], %s2909
          %2912 = dma.done %s2907, 2048
        $region92: #{tpu_custom_call.1} parent=87 // pred_fallthru
          _
      $region88: #{tpu_custom_call.1} parent=5 // pred_fallthru
        _
    $region6: #{tpu_custom_call.1} parent=1 // loop_footer
      %s30 = sadd.s32 1, %s26
    $region7: #{tpu_custom_call.1} parent=1 // loop_footer_branch
      %25 = sbr.rel target = $region3
    $region8: #{tpu_custom_call.1} parent=1 // loop_exit
      _
    %2913 = vsyncpa [#allocation3], 1
    %s2914 = scalar_lea.sflag [#allocation3], 1
    %2915 = vsyncpa %s2914, 1
    %2916 = vsyncpa [#allocation6], 1
    %s2917 = scalar_lea.sflag [#allocation6], 1
    %2918 = vsyncpa %s2917, 1
    %2919 = vsyncpa [#allocation9], 1
    %2920 = vsyncpa [#allocation4], 1
    %s2921 = scalar_lea.sflag [#allocation4], 1
    %2922 = vsyncpa %s2921, 1

</llo_original>
